<compile_context>
chip_gen: v7x
topology: tpu7x:2x2x1
jax: 0.10.0
libtpu: 0.0.40
codegen_flags: <defaults>
</compile_context>

<pallas_src>
import functools
import math

import jax
import jax.numpy as jnp
from jax.experimental import pallas as pl
from jax.experimental.pallas import tpu as pltpu


# ----------------------------- tiling helper --------------------------------

def _pick_tile(dim, target):
    """Largest tile <= target that evenly divides dim (dim itself if small)."""
    if dim <= target:
        return dim
    t = target
    while t > 1 and dim % t:
        t //= 2
    return t if dim % t == 0 else dim


# ----------------------------- Pallas kernels --------------------------------

def _gelu_new(h):
    # GPT-2 "gelu_new" (tanh approximation), f32 math (v5e has no bf16 EUP).
    c = math.sqrt(2.0 / math.pi)
    return 0.5 * h * (1.0 + jnp.tanh(c * (h + 0.044715 * h * h * h)))


def _linear_kernel(*refs, residual, gelu):
    """Tiled matmul with f32 accumulator; optional fused residual add / GELU."""
    if residual:
        x_ref, w_ref, c_ref, r_ref, o_ref, acc_ref = refs
    else:
        x_ref, w_ref, c_ref, o_ref, acc_ref = refs
        r_ref = None

    k = pl.program_id(2)

    @pl.when(k == 0)
    def _():
        acc_ref[...] = jnp.zeros_like(acc_ref)

    acc_ref[...] += jnp.dot(x_ref[...], w_ref[...],
                            preferred_element_type=jnp.float32)

    @pl.when(k == pl.num_programs(2) - 1)
    def _():
        h = acc_ref[...] + c_ref[...].astype(jnp.float32)
        if residual:
            h = h + r_ref[...].astype(jnp.float32)
        if gelu:
            h = _gelu_new(h)
        o_ref[...] = h.astype(o_ref.dtype)


def linear(x, w, c, residual=None, *, gelu=False, out_dtype=jnp.bfloat16,
           tm_target=256, tn_target=256, tk_target=512):
    # x: (M, K) bf16, w: (K, N) bf16, c: (1, N) f32 -> (M, N) out_dtype
    M, K = x.shape
    N = w.shape[1]
    tm = _pick_tile(M, tm_target)
    tn = _pick_tile(N, tn_target)
    tk = _pick_tile(K, tk_target)

    has_res = residual is not None
    kern = functools.partial(_linear_kernel, residual=has_res, gelu=gelu)

    in_specs = [
        pl.BlockSpec((tm, tk), lambda i, j, k: (i, k)),
        pl.BlockSpec((tk, tn), lambda i, j, k: (k, j)),
        pl.BlockSpec((1, tn), lambda i, j, k: (0, j)),
    ]
    args = [x, w, c]
    if has_res:
        in_specs.append(pl.BlockSpec((tm, tn), lambda i, j, k: (i, j)))
        args.append(residual)

    bytes_accessed = int(M * K * 2 + K * N * 2 + M * N * 2
                         + (M * N * 2 if has_res else 0) + N * 4)
    cost = pl.CostEstimate(flops=2 * M * N * K,
                           transcendentals=M * N if gelu else 0,
                           bytes_accessed=bytes_accessed)

    return pl.pallas_call(
        kern,
        grid=(M // tm, N // tn, K // tk),
        in_specs=in_specs,
        out_specs=pl.BlockSpec((tm, tn), lambda i, j, k: (i, j)),
        out_shape=jax.ShapeDtypeStruct((M, N), out_dtype),
        scratch_shapes=[pltpu.VMEM((tm, tn), jnp.float32)],
        compiler_params=pltpu.CompilerParams(
            dimension_semantics=("parallel", "parallel", "arbitrary")),
        cost_estimate=cost,
    )(*args)


def _ln_linear_kernel(x_ref, g_ref, b_ref, w_ref, c_ref, o_ref, *, gelu):
    """Fused LayerNorm -> Linear (-> optional GELU). Full K per row tile."""
    x = x_ref[...].astype(jnp.float32)
    mu = jnp.mean(x, axis=-1, keepdims=True)
    var = jnp.mean(jnp.square(x - mu), axis=-1, keepdims=True)
    xn = (x - mu) * jax.lax.rsqrt(var + 1e-5)
    xn = xn * g_ref[...] + b_ref[...]                      # f32
    h = jnp.dot(xn.astype(w_ref.dtype), w_ref[...],
                preferred_element_type=jnp.float32)
    h = h + c_ref[...].astype(jnp.float32)
    if gelu:
        h = _gelu_new(h)
    o_ref[...] = h.astype(o_ref.dtype)


def ln_linear(x, g, b, w, c, *, gelu=False, out_dtype=jnp.bfloat16,
              tm_target=256, tn_target=256):
    # x: (M, K) bf16, g/b: (1, K) f32, w: (K, N) bf16, c: (1, N) f32
    M, K = x.shape
    N = w.shape[1]
    tm = _pick_tile(M, tm_target)
    tn = _pick_tile(N, tn_target)
    kern = functools.partial(_ln_linear_kernel, gelu=gelu)

    cost = pl.CostEstimate(
        flops=2 * M * N * K + 8 * M * K,
        transcendentals=M * N if gelu else 0,
        bytes_accessed=int(M * K * 2 + K * N * 2 + M * N * 2 + 2 * K * 4 + N * 4))

    return pl.pallas_call(
        kern,
        grid=(M // tm, N // tn),
        in_specs=[pl.BlockSpec((tm, K), lambda i, j: (i, 0)),
                  pl.BlockSpec((1, K), lambda i, j: (0, 0)),
                  pl.BlockSpec((1, K), lambda i, j: (0, 0)),
                  pl.BlockSpec((K, tn), lambda i, j: (0, j)),
                  pl.BlockSpec((1, tn), lambda i, j: (0, j))],
        out_specs=pl.BlockSpec((tm, tn), lambda i, j: (i, j)),
        out_shape=jax.ShapeDtypeStruct((M, N), out_dtype),
        compiler_params=pltpu.CompilerParams(
            dimension_semantics=("parallel", "parallel")),
        cost_estimate=cost,
    )(x, g, b, w, c)


def _layernorm_kernel(x_ref, g_ref, b_ref, o_ref):
    x = x_ref[...].astype(jnp.float32)
    mu = jnp.mean(x, axis=-1, keepdims=True)
    var = jnp.mean(jnp.square(x - mu), axis=-1, keepdims=True)
    y = (x - mu) * jax.lax.rsqrt(var + 1e-5)
    o_ref[...] = (y * g_ref[...] + b_ref[...]).astype(o_ref.dtype)


def layernorm(x, g, b, *, out_dtype=jnp.bfloat16, tm_target=512):
    M, H = x.shape
    tm = _pick_tile(M, tm_target)
    return pl.pallas_call(
        _layernorm_kernel,
        grid=(M // tm,),
        in_specs=[pl.BlockSpec((tm, H), lambda i: (i, 0)),
                  pl.BlockSpec((1, H), lambda i: (0, 0)),
                  pl.BlockSpec((1, H), lambda i: (0, 0))],
        out_specs=pl.BlockSpec((tm, H), lambda i: (i, 0)),
        out_shape=jax.ShapeDtypeStruct((M, H), out_dtype),
        compiler_params=pltpu.CompilerParams(dimension_semantics=("parallel",)),
    )(x, g, b)


def _attn_kernel(qkv_ref, mask_ref, o_ref, *, n_head, head_dim, scale):
    # qkv_ref: (S, 3H) bf16 for one batch row; mask_ref: (1, S) f32 pad mask.
    S = qkv_ref.shape[0]
    H = n_head * head_dim
    qkv = qkv_ref[...]                                       # bf16 (S, 3H)
    pad = mask_ref[...]                                      # f32 (1, S)

    row = jax.lax.broadcasted_iota(jnp.int32, (S, S), 0)
    col = jax.lax.broadcasted_iota(jnp.int32, (S, S), 1)
    keep = (col <= row) & (pad > 0.5)                        # causal AND key-padding

    head_outs = []
    for h in range(n_head):
        q = qkv[:, h * head_dim:(h + 1) * head_dim]
        k = qkv[:, H + h * head_dim:H + (h + 1) * head_dim]
        v = qkv[:, 2 * H + h * head_dim:2 * H + (h + 1) * head_dim]

        s = jax.lax.dot_general(q, k, (((1,), (1,)), ((), ())),
                                preferred_element_type=jnp.float32) * scale
        s = jnp.where(keep, s, jnp.float32(-1e9))
        m = jnp.max(s, axis=-1, keepdims=True)
        p = jnp.exp(s - m)                                   # f32
        l = jnp.sum(p, axis=-1, keepdims=True)
        acc = jnp.dot(p.astype(v.dtype), v,
                      preferred_element_type=jnp.float32)
        head_outs.append(acc * pl.reciprocal(l, approx=True))

    o_ref[...] = jnp.concatenate(head_outs, axis=-1).astype(o_ref.dtype)


def attention(qkv, pad_mask, *, n_head, hidden):
    # qkv: (B*S, 3H) bf16; pad_mask: (B, 1, S) f32 -> (B*S, H) bf16
    BS, threeH = qkv.shape
    B = pad_mask.shape[0]
    S = BS // B
    D = hidden // n_head
    kern = functools.partial(_attn_kernel, n_head=n_head, head_dim=D,
                             scale=1.0 / math.sqrt(D))
    return pl.pallas_call(
        kern,
        grid=(B,),
        in_specs=[pl.BlockSpec((S, threeH), lambda b: (b, 0)),
                  pl.BlockSpec((None, 1, S), lambda b: (b, 0, 0))],
        out_specs=pl.BlockSpec((S, hidden), lambda b: (b, 0)),
        out_shape=jax.ShapeDtypeStruct((BS, hidden), jnp.bfloat16),
        compiler_params=pltpu.CompilerParams(dimension_semantics=("parallel",)),
    )(qkv, pad_mask)


# ----------------------------- model (glue) ---------------------------------

def init_params(key, *, vocab, max_seq, hidden, n_layer, n_head, n_classes):
    def nrm(k, shape, dtype=jnp.bfloat16):
        return (0.02 * jax.random.normal(k, shape, jnp.float32)).astype(dtype)

    n_pad = max(128, ((n_classes + 127) // 128) * 128)   # lane-dense head
    keys = jax.random.split(key, 3 + 4 * n_layer)
    params = {
        "wte": nrm(keys[0], (vocab, hidden)),
        "wpe": nrm(keys[1], (max_seq, hidden)),
        "lnf_g": jnp.ones((1, hidden), jnp.float32),
        "lnf_b": jnp.zeros((1, hidden), jnp.float32),
        # fc1: nn.Linear(hidden*max_seq, n_classes); stored transposed and
        # zero-padded to 128 output columns (logits sliced outside the kernel)
        "fc1_w": jnp.zeros((hidden * max_seq, n_pad), jnp.bfloat16).at[:, :n_classes]
                 .set(nrm(keys[2], (hidden * max_seq, n_classes))),
        "fc1_b": jnp.zeros((1, n_pad), jnp.float32),
        "blocks": [],
    }
    for l in range(n_layer):
        k0, k1, k2, k3 = keys[3 + 4 * l: 3 + 4 * (l + 1)]
        params["blocks"].append({
            "ln1_g": jnp.ones((1, hidden), jnp.float32),
            "ln1_b": jnp.zeros((1, hidden), jnp.float32),
            "w_qkv": nrm(k0, (hidden, 3 * hidden)),
            "b_qkv": jnp.zeros((1, 3 * hidden), jnp.float32),
            "w_proj": nrm(k1, (hidden, hidden)),
            "b_proj": jnp.zeros((1, hidden), jnp.float32),
            "ln2_g": jnp.ones((1, hidden), jnp.float32),
            "ln2_b": jnp.zeros((1, hidden), jnp.float32),
            "w_fc": nrm(k2, (hidden, 4 * hidden)),
            "b_fc": jnp.zeros((1, 4 * hidden), jnp.float32),
            "w_out": nrm(k3, (4 * hidden, hidden)),
            "b_out": jnp.zeros((1, hidden), jnp.float32),
        })
    return params


def forward(params, input_ids, mask, *, n_head, n_classes):
    B, S = input_ids.shape
    H = params["wte"].shape[1]

    # embedding gather (glue, plain JAX); activations are bf16 from here on
    x = (params["wte"][input_ids] + params["wpe"][:S][None, :, :]).astype(jnp.bfloat16)
    x = x.reshape(B * S, H)                                   # (B*S, H)
    pad = mask.astype(jnp.float32).reshape(B, 1, S)           # key padding mask

    for blk in params["blocks"]:
        # attention sub-block: x = x + proj(attn(ln1(x)))   (5 fused kernels/block)
        qkv = ln_linear(x, blk["ln1_g"], blk["ln1_b"], blk["w_qkv"], blk["b_qkv"])
        a = attention(qkv, pad, n_head=n_head, hidden=H)      # (B*S, H)
        x = linear(a, blk["w_proj"], blk["b_proj"], residual=x)

        # MLP sub-block: x = x + W2(gelu(W1(ln2(x))))
        h = ln_linear(x, blk["ln2_g"], blk["ln2_b"], blk["w_fc"], blk["b_fc"],
                      gelu=True)
        x = linear(h, blk["w_out"], blk["b_out"], residual=x)

    gpt_out = layernorm(x, params["lnf_g"], params["lnf_b"])  # (B*S, H) bf16

    # classifier head: flatten (B, S*H) then fc1 (padded to 128 cols) -> slice
    flat = gpt_out.reshape(B, S * H)
    logits = linear(flat, params["fc1_w"], params["fc1_b"], out_dtype=jnp.float32)
    return logits[:, :n_classes]


# --------------------------------- main --------------------------------------

if __name__ == "__main__":
    B, S, H, N_HEAD, N_LAYER, VOCAB, N_CLASSES = 2, 8, 32, 2, 2, 64, 3

    key = jax.random.PRNGKey(0)
    k_params, k_ids = jax.random.split(key)

    params = init_params(k_params, vocab=VOCAB, max_seq=S, hidden=H,
                         n_layer=N_LAYER, n_head=N_HEAD, n_classes=N_CLASSES)

    input_ids = jax.random.randint(k_ids, (B, S), 0, VOCAB, dtype=jnp.int32)
    mask = jnp.ones((B, S), jnp.int32).at[1, S - 2:].set(0)   # pad last 2 of row 1

    fwd = jax.jit(functools.partial(forward, n_head=N_HEAD, n_classes=N_CLASSES))
    logits = fwd(params, input_ids, mask)
    jax.block_until_ready(logits)

    assert logits.shape == (B, N_CLASSES) and logits.dtype == jnp.float32
    print("KERNEL_OK")
</pallas_src>

<mosaic_0001>
module attributes {stable_mosaic.version = 11 : i64} {
  func.func @_ln_linear_kernel(%arg0: i32, %arg1: i32, %arg2: memref<16x32xbf16, #tpu.memory_space<vmem>>, %arg3: memref<1x32xf32, #tpu.memory_space<vmem>>, %arg4: memref<1x32xf32, #tpu.memory_space<vmem>>, %arg5: memref<32x96xbf16, #tpu.memory_space<vmem>>, %arg6: memref<1x96xf32, #tpu.memory_space<vmem>>, %arg7: memref<16x96xbf16, #tpu.memory_space<vmem>>) attributes {dimension_semantics = [#tpu.dimension_semantics<parallel>, #tpu.dimension_semantics<parallel>], iteration_bounds = array<i64: 1, 1>, scalar_prefetch = 0 : i64, scratch_operands = 0 : i64, tpu.core_type = #tpu.core_type<tc>, window_params = [{transform_indices = @transform_0, window_bounds = array<i64: 16, 32>}, {pipeline_mode = #tpu.pipeline_mode<synchronous>, transform_indices = @transform_1, window_bounds = array<i64: 1, 32>}, {pipeline_mode = #tpu.pipeline_mode<synchronous>, transform_indices = @transform_2, window_bounds = array<i64: 1, 32>}, {transform_indices = @transform_3, window_bounds = array<i64: 32, 96>}, {transform_indices = @transform_4, window_bounds = array<i64: 1, 96>}, {transform_indices = @transform_5, window_bounds = array<i64: 16, 96>}]} {
    %c0 = arith.constant 0 : index
    %c0_0 = arith.constant 0 : index
    %0 = vector.load %arg2[%c0, %c0_0] : memref<16x32xbf16, #tpu.memory_space<vmem>>, vector<16x32xbf16>
    %1 = arith.extf %0 : vector<16x32xbf16> to vector<16x32xf32>
    %cst = arith.constant dense<0.000000e+00> : vector<16xf32>
    %2 = vector.multi_reduction <add>, %1, %cst [1] : vector<16x32xf32> to vector<16xf32>
    %3 = vector.shape_cast %2 : vector<16xf32> to vector<16x1xf32>
    %cst_1 = arith.constant 3.200000e+01 : f32
    %4 = vector.broadcast %cst_1 : f32 to vector<16x1xf32>
    %5 = arith.divf %3, %4 : vector<16x1xf32>
    %6 = vector.broadcast %5 : vector<16x1xf32> to vector<16x32xf32>
    %7 = arith.subf %1, %6 : vector<16x32xf32>
    %8 = arith.mulf %7, %7 : vector<16x32xf32>
    %cst_2 = arith.constant dense<0.000000e+00> : vector<16xf32>
    %9 = vector.multi_reduction <add>, %8, %cst_2 [1] : vector<16x32xf32> to vector<16xf32>
    %10 = vector.shape_cast %9 : vector<16xf32> to vector<16x1xf32>
    %cst_3 = arith.constant 3.200000e+01 : f32
    %11 = vector.broadcast %cst_3 : f32 to vector<16x1xf32>
    %12 = arith.divf %10, %11 : vector<16x1xf32>
    %13 = vector.broadcast %5 : vector<16x1xf32> to vector<16x32xf32>
    %14 = arith.subf %1, %13 : vector<16x32xf32>
    %cst_4 = arith.constant 9.99999974E-6 : f32
    %15 = vector.broadcast %cst_4 : f32 to vector<16x1xf32>
    %16 = arith.addf %12, %15 : vector<16x1xf32>
    %17 = math.rsqrt %16 : vector<16x1xf32>
    %18 = vector.broadcast %17 : vector<16x1xf32> to vector<16x32xf32>
    %19 = arith.mulf %14, %18 : vector<16x32xf32>
    %c0_5 = arith.constant 0 : index
    %c0_6 = arith.constant 0 : index
    %20 = vector.load %arg3[%c0_5, %c0_6] : memref<1x32xf32, #tpu.memory_space<vmem>>, vector<1x32xf32>
    %21 = vector.broadcast %20 : vector<1x32xf32> to vector<16x32xf32>
    %22 = arith.mulf %19, %21 : vector<16x32xf32>
    %c0_7 = arith.constant 0 : index
    %c0_8 = arith.constant 0 : index
    %23 = vector.load %arg4[%c0_7, %c0_8] : memref<1x32xf32, #tpu.memory_space<vmem>>, vector<1x32xf32>
    %24 = vector.broadcast %23 : vector<1x32xf32> to vector<16x32xf32>
    %25 = arith.addf %22, %24 : vector<16x32xf32>
    %26 = arith.truncf %25 : vector<16x32xf32> to vector<16x32xbf16>
    %c0_9 = arith.constant 0 : index
    %c0_10 = arith.constant 0 : index
    %27 = vector.load %arg5[%c0_9, %c0_10] : memref<32x96xbf16, #tpu.memory_space<vmem>>, vector<32x96xbf16>
    %cst_11 = arith.constant dense<0.000000e+00> : vector<16x96xf32>
    %28 = tpu.matmul %26, %27, %cst_11 {dimension_numbers = #tpu.dot_dimension_numbers<[1], [0], [0], [1], [0, 0, 1, 1], [], []>} : vector<16x32xbf16>, vector<32x96xbf16>, vector<16x96xf32> -> vector<16x96xf32>
    %c0_12 = arith.constant 0 : index
    %c0_13 = arith.constant 0 : index
    %29 = vector.load %arg6[%c0_12, %c0_13] : memref<1x96xf32, #tpu.memory_space<vmem>>, vector<1x96xf32>
    %30 = vector.broadcast %29 : vector<1x96xf32> to vector<16x96xf32>
    %31 = arith.addf %28, %30 : vector<16x96xf32>
    %32 = arith.truncf %31 : vector<16x96xf32> to vector<16x96xbf16>
    %c0_14 = arith.constant 0 : index
    %c0_15 = arith.constant 0 : index
    %33 = vector.load %arg7[%c0_14, %c0_15] : memref<16x96xbf16, #tpu.memory_space<vmem>>, vector<16x96xbf16>
    tpu.vector_store %arg7[%c0_14, %c0_15], %32 {strides = array<i32>} : memref<16x96xbf16, #tpu.memory_space<vmem>>, vector<16x96xbf16>,
    return
  }
  func.func @transform_0(%arg0: i32, %arg1: i32) -> (i32, i32) {
    %c0_i32 = arith.constant 0 : i32
    %c0_i32_0 = arith.constant 0 : i32
    return %arg0, %c0_i32 : i32, i32
  }
  func.func @transform_1(%arg0: i32, %arg1: i32) -> (i32, i32) {
    %c0_i32 = arith.constant 0 : i32
    %c0_i32_0 = arith.constant 0 : i32
    %c0_i32_1 = arith.constant 0 : i32
    return %c0_i32, %c0_i32_0 : i32, i32
  }
  func.func @transform_2(%arg0: i32, %arg1: i32) -> (i32, i32) {
    %c0_i32 = arith.constant 0 : i32
    %c0_i32_0 = arith.constant 0 : i32
    %c0_i32_1 = arith.constant 0 : i32
    return %c0_i32, %c0_i32_0 : i32, i32
  }
  func.func @transform_3(%arg0: i32, %arg1: i32) -> (i32, i32) {
    %c0_i32 = arith.constant 0 : i32
    %c0_i32_0 = arith.constant 0 : i32
    return %c0_i32, %arg1 : i32, i32
  }
  func.func @transform_4(%arg0: i32, %arg1: i32) -> (i32, i32) {
    %c0_i32 = arith.constant 0 : i32
    %c0_i32_0 = arith.constant 0 : i32
    return %c0_i32, %arg1 : i32, i32
  }
  func.func @transform_5(%arg0: i32, %arg1: i32) -> (i32, i32) {
    %c0_i32 = arith.constant 0 : i32
    return %arg0, %arg1 : i32, i32
  }
}

module attributes {stable_mosaic.version = 11 : i64} {
  func.func @_linear_kernel(%arg0: i32, %arg1: i32, %arg2: i32, %arg3: memref<16x32xbf16, #tpu.memory_space<vmem>>, %arg4: memref<32x32xbf16, #tpu.memory_space<vmem>>, %arg5: memref<1x32xf32, #tpu.memory_space<vmem>>, %arg6: memref<16x32xbf16, #tpu.memory_space<vmem>>, %arg7: memref<16x32xbf16, #tpu.memory_space<vmem>>, %arg8: memref<16x32xf32, #tpu.memory_space<vmem>>) attributes {dimension_semantics = [#tpu.dimension_semantics<parallel>, #tpu.dimension_semantics<parallel>, #tpu.dimension_semantics<arbitrary>], iteration_bounds = array<i64: 1, 1, 1>, scalar_prefetch = 0 : i64, scratch_operands = 1 : i64, tpu.core_type = #tpu.core_type<tc>, window_params = [{transform_indices = @transform_0, window_bounds = array<i64: 16, 32>}, {transform_indices = @transform_1, window_bounds = array<i64: 32, 32>}, {transform_indices = @transform_2, window_bounds = array<i64: 1, 32>}, {transform_indices = @transform_3, window_bounds = array<i64: 16, 32>}, {transform_indices = @transform_4, window_bounds = array<i64: 16, 32>}]} {
    %c0_i32 = arith.constant 0 : i32
    %0 = arith.cmpi eq, %arg2, %c0_i32 : i32
    %1 = arith.extui %0 : i1 to i32
    %c0_i32_0 = arith.constant 0 : i32
    %2 = arith.cmpi ne, %1, %c0_i32_0 : i32
    scf.if %2 {
      %cst_10 = arith.constant 0.000000e+00 : f32
      %12 = vector.broadcast %cst_10 : f32 to vector<16x32xf32>
      %c0_11 = arith.constant 0 : index
      %c0_12 = arith.constant 0 : index
      %13 = vector.load %arg8[%c0_11, %c0_12] : memref<16x32xf32, #tpu.memory_space<vmem>>, vector<16x32xf32>
      tpu.vector_store %arg8[%c0_11, %c0_12], %12 {strides = array<i32>} : memref<16x32xf32, #tpu.memory_space<vmem>>, vector<16x32xf32>,
    } else {
    }
    %c0 = arith.constant 0 : index
    %c0_1 = arith.constant 0 : index
    %3 = vector.load %arg8[%c0, %c0_1] : memref<16x32xf32, #tpu.memory_space<vmem>>, vector<16x32xf32>
    %c0_2 = arith.constant 0 : index
    %c0_3 = arith.constant 0 : index
    %4 = vector.load %arg3[%c0_2, %c0_3] : memref<16x32xbf16, #tpu.memory_space<vmem>>, vector<16x32xbf16>
    %c0_4 = arith.constant 0 : index
    %c0_5 = arith.constant 0 : index
    %5 = vector.load %arg4[%c0_4, %c0_5] : memref<32x32xbf16, #tpu.memory_space<vmem>>, vector<32x32xbf16>
    %cst = arith.constant dense<0.000000e+00> : vector<16x32xf32>
    %6 = tpu.matmul %4, %5, %cst {dimension_numbers = #tpu.dot_dimension_numbers<[1], [0], [0], [1], [0, 0, 1, 1], [], []>} : vector<16x32xbf16>, vector<32x32xbf16>, vector<16x32xf32> -> vector<16x32xf32>
    %7 = arith.addf %3, %6 : vector<16x32xf32>
    %c0_6 = arith.constant 0 : index
    %c0_7 = arith.constant 0 : index
    %8 = vector.load %arg8[%c0_6, %c0_7] : memref<16x32xf32, #tpu.memory_space<vmem>>, vector<16x32xf32>
    tpu.vector_store %arg8[%c0_6, %c0_7], %7 {strides = array<i32>} : memref<16x32xf32, #tpu.memory_space<vmem>>, vector<16x32xf32>,
    %c0_i32_8 = arith.constant 0 : i32
    %9 = arith.cmpi eq, %arg2, %c0_i32_8 : i32
    %10 = arith.extui %9 : i1 to i32
    %c0_i32_9 = arith.constant 0 : i32
    %11 = arith.cmpi ne, %10, %c0_i32_9 : i32
    scf.if %11 {
      %c0_10 = arith.constant 0 : index
      %c0_11 = arith.constant 0 : index
      %12 = vector.load %arg8[%c0_10, %c0_11] : memref<16x32xf32, #tpu.memory_space<vmem>>, vector<16x32xf32>
      %c0_12 = arith.constant 0 : index
      %c0_13 = arith.constant 0 : index
      %13 = vector.load %arg5[%c0_12, %c0_13] : memref<1x32xf32, #tpu.memory_space<vmem>>, vector<1x32xf32>
      %14 = vector.broadcast %13 : vector<1x32xf32> to vector<16x32xf32>
      %15 = arith.addf %12, %14 : vector<16x32xf32>
      %c0_14 = arith.constant 0 : index
      %c0_15 = arith.constant 0 : index
      %16 = vector.load %arg6[%c0_14, %c0_15] : memref<16x32xbf16, #tpu.memory_space<vmem>>, vector<16x32xbf16>
      %17 = arith.extf %16 : vector<16x32xbf16> to vector<16x32xf32>
      %18 = arith.addf %15, %17 : vector<16x32xf32>
      %19 = arith.truncf %18 : vector<16x32xf32> to vector<16x32xbf16>
      %c0_16 = arith.constant 0 : index
      %c0_17 = arith.constant 0 : index
      %20 = vector.load %arg7[%c0_16, %c0_17] : memref<16x32xbf16, #tpu.memory_space<vmem>>, vector<16x32xbf16>
      tpu.vector_store %arg7[%c0_16, %c0_17], %19 {strides = array<i32>} : memref<16x32xbf16, #tpu.memory_space<vmem>>, vector<16x32xbf16>,
    } else {
    }
    return
  }
  func.func @transform_0(%arg0: i32, %arg1: i32, %arg2: i32) -> (i32, i32) {
    %c0_i32 = arith.constant 0 : i32
    return %arg0, %arg2 : i32, i32
  }
  func.func @transform_1(%arg0: i32, %arg1: i32, %arg2: i32) -> (i32, i32) {
    %c0_i32 = arith.constant 0 : i32
    return %arg2, %arg1 : i32, i32
  }
  func.func @transform_2(%arg0: i32, %arg1: i32, %arg2: i32) -> (i32, i32) {
    %c0_i32 = arith.constant 0 : i32
    %c0_i32_0 = arith.constant 0 : i32
    return %c0_i32, %arg1 : i32, i32
  }
  func.func @transform_3(%arg0: i32, %arg1: i32, %arg2: i32) -> (i32, i32) {
    %c0_i32 = arith.constant 0 : i32
    return %arg0, %arg1 : i32, i32
  }
  func.func @transform_4(%arg0: i32, %arg1: i32, %arg2: i32) -> (i32, i32) {
    %c0_i32 = arith.constant 0 : i32
    return %arg0, %arg1 : i32, i32
  }
}

module attributes {stable_mosaic.version = 11 : i64} {
  func.func @_ln_linear_kernel(%arg0: i32, %arg1: i32, %arg2: memref<16x32xbf16, #tpu.memory_space<vmem>>, %arg3: memref<1x32xf32, #tpu.memory_space<vmem>>, %arg4: memref<1x32xf32, #tpu.memory_space<vmem>>, %arg5: memref<32x128xbf16, #tpu.memory_space<vmem>>, %arg6: memref<1x128xf32, #tpu.memory_space<vmem>>, %arg7: memref<16x128xbf16, #tpu.memory_space<vmem>>) attributes {dimension_semantics = [#tpu.dimension_semantics<parallel>, #tpu.dimension_semantics<parallel>], iteration_bounds = array<i64: 1, 1>, scalar_prefetch = 0 : i64, scratch_operands = 0 : i64, tpu.core_type = #tpu.core_type<tc>, window_params = [{transform_indices = @transform_0, window_bounds = array<i64: 16, 32>}, {pipeline_mode = #tpu.pipeline_mode<synchronous>, transform_indices = @transform_1, window_bounds = array<i64: 1, 32>}, {pipeline_mode = #tpu.pipeline_mode<synchronous>, transform_indices = @transform_2, window_bounds = array<i64: 1, 32>}, {transform_indices = @transform_3, window_bounds = array<i64: 32, 128>}, {transform_indices = @transform_4, window_bounds = array<i64: 1, 128>}, {transform_indices = @transform_5, window_bounds = array<i64: 16, 128>}]} {
    %c0 = arith.constant 0 : index
    %c0_0 = arith.constant 0 : index
    %0 = vector.load %arg2[%c0, %c0_0] : memref<16x32xbf16, #tpu.memory_space<vmem>>, vector<16x32xbf16>
    %1 = arith.extf %0 : vector<16x32xbf16> to vector<16x32xf32>
    %cst = arith.constant dense<0.000000e+00> : vector<16xf32>
    %2 = vector.multi_reduction <add>, %1, %cst [1] : vector<16x32xf32> to vector<16xf32>
    %3 = vector.shape_cast %2 : vector<16xf32> to vector<16x1xf32>
    %cst_1 = arith.constant 3.200000e+01 : f32
    %4 = vector.broadcast %cst_1 : f32 to vector<16x1xf32>
    %5 = arith.divf %3, %4 : vector<16x1xf32>
    %6 = vector.broadcast %5 : vector<16x1xf32> to vector<16x32xf32>
    %7 = arith.subf %1, %6 : vector<16x32xf32>
    %8 = arith.mulf %7, %7 : vector<16x32xf32>
    %cst_2 = arith.constant dense<0.000000e+00> : vector<16xf32>
    %9 = vector.multi_reduction <add>, %8, %cst_2 [1] : vector<16x32xf32> to vector<16xf32>
    %10 = vector.shape_cast %9 : vector<16xf32> to vector<16x1xf32>
    %cst_3 = arith.constant 3.200000e+01 : f32
    %11 = vector.broadcast %cst_3 : f32 to vector<16x1xf32>
    %12 = arith.divf %10, %11 : vector<16x1xf32>
    %13 = vector.broadcast %5 : vector<16x1xf32> to vector<16x32xf32>
    %14 = arith.subf %1, %13 : vector<16x32xf32>
    %cst_4 = arith.constant 9.99999974E-6 : f32
    %15 = vector.broadcast %cst_4 : f32 to vector<16x1xf32>
    %16 = arith.addf %12, %15 : vector<16x1xf32>
    %17 = math.rsqrt %16 : vector<16x1xf32>
    %18 = vector.broadcast %17 : vector<16x1xf32> to vector<16x32xf32>
    %19 = arith.mulf %14, %18 : vector<16x32xf32>
    %c0_5 = arith.constant 0 : index
    %c0_6 = arith.constant 0 : index
    %20 = vector.load %arg3[%c0_5, %c0_6] : memref<1x32xf32, #tpu.memory_space<vmem>>, vector<1x32xf32>
    %21 = vector.broadcast %20 : vector<1x32xf32> to vector<16x32xf32>
    %22 = arith.mulf %19, %21 : vector<16x32xf32>
    %c0_7 = arith.constant 0 : index
    %c0_8 = arith.constant 0 : index
    %23 = vector.load %arg4[%c0_7, %c0_8] : memref<1x32xf32, #tpu.memory_space<vmem>>, vector<1x32xf32>
    %24 = vector.broadcast %23 : vector<1x32xf32> to vector<16x32xf32>
    %25 = arith.addf %22, %24 : vector<16x32xf32>
    %26 = arith.truncf %25 : vector<16x32xf32> to vector<16x32xbf16>
    %c0_9 = arith.constant 0 : index
    %c0_10 = arith.constant 0 : index
    %27 = vector.load %arg5[%c0_9, %c0_10] : memref<32x128xbf16, #tpu.memory_space<vmem>>, vector<32x128xbf16>
    %cst_11 = arith.constant dense<0.000000e+00> : vector<16x128xf32>
    %28 = tpu.matmul %26, %27, %cst_11 {dimension_numbers = #tpu.dot_dimension_numbers<[1], [0], [0], [1], [0, 0, 1, 1], [], []>} : vector<16x32xbf16>, vector<32x128xbf16>, vector<16x128xf32> -> vector<16x128xf32>
    %c0_12 = arith.constant 0 : index
    %c0_13 = arith.constant 0 : index
    %29 = vector.load %arg6[%c0_12, %c0_13] : memref<1x128xf32, #tpu.memory_space<vmem>>, vector<1x128xf32>
    %30 = vector.broadcast %29 : vector<1x128xf32> to vector<16x128xf32>
    %31 = arith.addf %28, %30 : vector<16x128xf32>
    %cst_14 = arith.constant 5.000000e-01 : f32
    %32 = vector.broadcast %cst_14 : f32 to vector<16x128xf32>
    %33 = arith.mulf %32, %31 : vector<16x128xf32>
    %cst_15 = arith.constant 4.471500e-02 : f32
    %34 = vector.broadcast %cst_15 : f32 to vector<16x128xf32>
    %35 = arith.mulf %34, %31 : vector<16x128xf32>
    %36 = arith.mulf %35, %31 : vector<16x128xf32>
    %37 = arith.mulf %36, %31 : vector<16x128xf32>
    %38 = arith.addf %31, %37 : vector<16x128xf32>
    %cst_16 = arith.constant 0.797884583 : f32
    %39 = vector.broadcast %cst_16 : f32 to vector<16x128xf32>
    %40 = arith.mulf %39, %38 : vector<16x128xf32>
    %41 = math.tanh %40 : vector<16x128xf32>
    %cst_17 = arith.constant 1.000000e+00 : f32
    %42 = vector.broadcast %cst_17 : f32 to vector<16x128xf32>
    %43 = arith.addf %42, %41 : vector<16x128xf32>
    %44 = arith.mulf %33, %43 : vector<16x128xf32>
    %45 = arith.truncf %44 : vector<16x128xf32> to vector<16x128xbf16>
    %c0_18 = arith.constant 0 : index
    %c0_19 = arith.constant 0 : index
    %46 = vector.load %arg7[%c0_18, %c0_19] : memref<16x128xbf16, #tpu.memory_space<vmem>>, vector<16x128xbf16>
    tpu.vector_store %arg7[%c0_18, %c0_19], %45 {strides = array<i32>} : memref<16x128xbf16, #tpu.memory_space<vmem>>, vector<16x128xbf16>,
    return
  }
  func.func @transform_0(%arg0: i32, %arg1: i32) -> (i32, i32) {
    %c0_i32 = arith.constant 0 : i32
    %c0_i32_0 = arith.constant 0 : i32
    return %arg0, %c0_i32 : i32, i32
  }
  func.func @transform_1(%arg0: i32, %arg1: i32) -> (i32, i32) {
    %c0_i32 = arith.constant 0 : i32
    %c0_i32_0 = arith.constant 0 : i32
    %c0_i32_1 = arith.constant 0 : i32
    return %c0_i32, %c0_i32_0 : i32, i32
  }
  func.func @transform_2(%arg0: i32, %arg1: i32) -> (i32, i32) {
    %c0_i32 = arith.constant 0 : i32
    %c0_i32_0 = arith.constant 0 : i32
    %c0_i32_1 = arith.constant 0 : i32
    return %c0_i32, %c0_i32_0 : i32, i32
  }
  func.func @transform_3(%arg0: i32, %arg1: i32) -> (i32, i32) {
    %c0_i32 = arith.constant 0 : i32
    %c0_i32_0 = arith.constant 0 : i32
    return %c0_i32, %arg1 : i32, i32
  }
  func.func @transform_4(%arg0: i32, %arg1: i32) -> (i32, i32) {
    %c0_i32 = arith.constant 0 : i32
    %c0_i32_0 = arith.constant 0 : i32
    return %c0_i32, %arg1 : i32, i32
  }
  func.func @transform_5(%arg0: i32, %arg1: i32) -> (i32, i32) {
    %c0_i32 = arith.constant 0 : i32
    return %arg0, %arg1 : i32, i32
  }
}

module attributes {stable_mosaic.version = 11 : i64} {
  func.func @_attn_kernel(%arg0: i32, %arg1: memref<8x96xbf16, #tpu.memory_space<vmem>>, %arg2: memref<1x1x8xf32, #tpu.memory_space<vmem>>, %arg3: memref<8x32xbf16, #tpu.memory_space<vmem>>) attributes {dimension_semantics = [#tpu.dimension_semantics<parallel>], iteration_bounds = array<i64: 2>, scalar_prefetch = 0 : i64, scratch_operands = 0 : i64, tpu.core_type = #tpu.core_type<tc>, window_params = [{transform_indices = @transform_0, window_bounds = array<i64: 8, 96>}, {transform_indices = @transform_1, window_bounds = array<i64: 1, 1, 8>}, {transform_indices = @transform_2, window_bounds = array<i64: 8, 32>}]} {
    %c0 = arith.constant 0 : index
    %c0_0 = arith.constant 0 : index
    %0 = vector.load %arg1[%c0, %c0_0] : memref<8x96xbf16, #tpu.memory_space<vmem>>, vector<8x96xbf16>
    %c0_1 = arith.constant 0 : index
    %c0_2 = arith.constant 0 : index
    %c0_3 = arith.constant 0 : index
    %1 = vector.load %arg2[%c0_1, %c0_2, %c0_3] : memref<1x1x8xf32, #tpu.memory_space<vmem>>, vector<1x1x8xf32>
    %2 = vector.shape_cast %1 : vector<1x1x8xf32> to vector<1x8xf32>
    %3 = tpu.iota {dimensions = array<i32: 0>} : vector<8x8xi32>
    %4 = tpu.iota {dimensions = array<i32: 1>} : vector<8x8xi32>
    %5 = arith.cmpi sle, %4, %3 : vector<8x8xi32>
    %cst = arith.constant 5.000000e-01 : f32
    %6 = vector.broadcast %cst : f32 to vector<1x8xf32>
    %7 = arith.cmpf ogt, %2, %6 : vector<1x8xf32>
    %8 = vector.broadcast %7 : vector<1x8xi1> to vector<8x8xi1>
    %9 = arith.andi %5, %8 : vector<8x8xi1>
    %10 = vector.extract_strided_slice %0 {offsets = [0, 0], sizes = [8, 16], strides = [1, 1]} : vector<8x96xbf16> to vector<8x16xbf16>
    %11 = vector.extract_strided_slice %0 {offsets = [0, 32], sizes = [8, 16], strides = [1, 1]} : vector<8x96xbf16> to vector<8x16xbf16>
    %12 = vector.extract_strided_slice %0 {offsets = [0, 64], sizes = [8, 16], strides = [1, 1]} : vector<8x96xbf16> to vector<8x16xbf16>
    %cst_4 = arith.constant dense<0.000000e+00> : vector<8x8xf32>
    %13 = tpu.matmul %10, %11, %cst_4 {dimension_numbers = #tpu.dot_dimension_numbers<[1], [1], [0], [0], [0, 0, 1, 0], [], []>} : vector<8x16xbf16>, vector<8x16xbf16>, vector<8x8xf32> -> vector<8x8xf32>
    %cst_5 = arith.constant 2.500000e-01 : f32
    %14 = vector.broadcast %cst_5 : f32 to vector<8x8xf32>
    %15 = arith.mulf %13, %14 : vector<8x8xf32>
    %cst_6 = arith.constant -1.000000e+09 : f32
    %16 = vector.broadcast %cst_6 : f32 to vector<8x8xf32>
    %17 = arith.select %9, %15, %16 : vector<8x8xi1>, vector<8x8xf32>
    %cst_7 = arith.constant dense<0xFF800000> : vector<8xf32>
    %18 = vector.multi_reduction <maximumf>, %17, %cst_7 [1] : vector<8x8xf32> to vector<8xf32>
    %19 = vector.shape_cast %18 : vector<8xf32> to vector<8x1xf32>
    %20 = vector.broadcast %19 : vector<8x1xf32> to vector<8x8xf32>
    %21 = arith.subf %17, %20 : vector<8x8xf32>
    %22 = math.exp %21 : vector<8x8xf32>
    %cst_8 = arith.constant dense<0.000000e+00> : vector<8xf32>
    %23 = vector.multi_reduction <add>, %22, %cst_8 [1] : vector<8x8xf32> to vector<8xf32>
    %24 = vector.shape_cast %23 : vector<8xf32> to vector<8x1xf32>
    %25 = arith.truncf %22 : vector<8x8xf32> to vector<8x8xbf16>
    %cst_9 = arith.constant dense<0.000000e+00> : vector<8x16xf32>
    %26 = tpu.matmul %25, %12, %cst_9 {dimension_numbers = #tpu.dot_dimension_numbers<[1], [0], [0], [1], [0, 0, 1, 1], [], []>} : vector<8x8xbf16>, vector<8x16xbf16>, vector<8x16xf32> -> vector<8x16xf32>
    %27 = tpu.reciprocal %24 {approx = true} : vector<8x1xf32> -> vector<8x1xf32>
    %28 = vector.broadcast %27 : vector<8x1xf32> to vector<8x16xf32>
    %29 = arith.mulf %26, %28 : vector<8x16xf32>
    %30 = vector.extract_strided_slice %0 {offsets = [0, 16], sizes = [8, 16], strides = [1, 1]} : vector<8x96xbf16> to vector<8x16xbf16>
    %31 = vector.extract_strided_slice %0 {offsets = [0, 48], sizes = [8, 16], strides = [1, 1]} : vector<8x96xbf16> to vector<8x16xbf16>
    %32 = vector.extract_strided_slice %0 {offsets = [0, 80], sizes = [8, 16], strides = [1, 1]} : vector<8x96xbf16> to vector<8x16xbf16>
    %cst_10 = arith.constant dense<0.000000e+00> : vector<8x8xf32>
    %33 = tpu.matmul %30, %31, %cst_10 {dimension_numbers = #tpu.dot_dimension_numbers<[1], [1], [0], [0], [0, 0, 1, 0], [], []>} : vector<8x16xbf16>, vector<8x16xbf16>, vector<8x8xf32> -> vector<8x8xf32>
    %cst_11 = arith.constant 2.500000e-01 : f32
    %34 = vector.broadcast %cst_11 : f32 to vector<8x8xf32>
    %35 = arith.mulf %33, %34 : vector<8x8xf32>
    %cst_12 = arith.constant -1.000000e+09 : f32
    %36 = vector.broadcast %cst_12 : f32 to vector<8x8xf32>
    %37 = arith.select %9, %35, %36 : vector<8x8xi1>, vector<8x8xf32>
    %cst_13 = arith.constant dense<0xFF800000> : vector<8xf32>
    %38 = vector.multi_reduction <maximumf>, %37, %cst_13 [1] : vector<8x8xf32> to vector<8xf32>
    %39 = vector.shape_cast %38 : vector<8xf32> to vector<8x1xf32>
    %40 = vector.broadcast %39 : vector<8x1xf32> to vector<8x8xf32>
    %41 = arith.subf %37, %40 : vector<8x8xf32>
    %42 = math.exp %41 : vector<8x8xf32>
    %cst_14 = arith.constant dense<0.000000e+00> : vector<8xf32>
    %43 = vector.multi_reduction <add>, %42, %cst_14 [1] : vector<8x8xf32> to vector<8xf32>
    %44 = vector.shape_cast %43 : vector<8xf32> to vector<8x1xf32>
    %45 = arith.truncf %42 : vector<8x8xf32> to vector<8x8xbf16>
    %cst_15 = arith.constant dense<0.000000e+00> : vector<8x16xf32>
    %46 = tpu.matmul %45, %32, %cst_15 {dimension_numbers = #tpu.dot_dimension_numbers<[1], [0], [0], [1], [0, 0, 1, 1], [], []>} : vector<8x8xbf16>, vector<8x16xbf16>, vector<8x16xf32> -> vector<8x16xf32>
    %47 = tpu.reciprocal %44 {approx = true} : vector<8x1xf32> -> vector<8x1xf32>
    %48 = vector.broadcast %47 : vector<8x1xf32> to vector<8x16xf32>
    %49 = arith.mulf %46, %48 : vector<8x16xf32>
    %50 = tpu.concatenate %29, %49 in 1 : vector<8x16xf32>, vector<8x16xf32> -> vector<8x32xf32>
    %51 = arith.truncf %50 : vector<8x32xf32> to vector<8x32xbf16>
    %c0_16 = arith.constant 0 : index
    %c0_17 = arith.constant 0 : index
    %52 = vector.load %arg3[%c0_16, %c0_17] : memref<8x32xbf16, #tpu.memory_space<vmem>>, vector<8x32xbf16>
    tpu.vector_store %arg3[%c0_16, %c0_17], %51 {strides = array<i32>} : memref<8x32xbf16, #tpu.memory_space<vmem>>, vector<8x32xbf16>,
    return
  }
  func.func @transform_0(%arg0: i32) -> (i32, i32) {
    %c0_i32 = arith.constant 0 : i32
    %c0_i32_0 = arith.constant 0 : i32
    return %arg0, %c0_i32 : i32, i32
  }
  func.func @transform_1(%arg0: i32) -> (i32, i32, i32) {
    %c0_i32 = arith.constant 0 : i32
    %c0_i32_0 = arith.constant 0 : i32
    %c0_i32_1 = arith.constant 0 : i32
    return %arg0, %c0_i32, %c0_i32_0 : i32, i32, i32
  }
  func.func @transform_2(%arg0: i32) -> (i32, i32) {
    %c0_i32 = arith.constant 0 : i32
    %c0_i32_0 = arith.constant 0 : i32
    return %arg0, %c0_i32 : i32, i32
  }
}

module attributes {stable_mosaic.version = 11 : i64} {
  func.func @_layernorm_kernel(%arg0: i32, %arg1: memref<16x32xbf16, #tpu.memory_space<vmem>>, %arg2: memref<1x32xf32, #tpu.memory_space<vmem>>, %arg3: memref<1x32xf32, #tpu.memory_space<vmem>>, %arg4: memref<16x32xbf16, #tpu.memory_space<vmem>>) attributes {dimension_semantics = [#tpu.dimension_semantics<parallel>], iteration_bounds = array<i64: 1>, scalar_prefetch = 0 : i64, scratch_operands = 0 : i64, tpu.core_type = #tpu.core_type<tc>, window_params = [{transform_indices = @transform_0, window_bounds = array<i64: 16, 32>}, {pipeline_mode = #tpu.pipeline_mode<synchronous>, transform_indices = @transform_1, window_bounds = array<i64: 1, 32>}, {pipeline_mode = #tpu.pipeline_mode<synchronous>, transform_indices = @transform_2, window_bounds = array<i64: 1, 32>}, {transform_indices = @transform_3, window_bounds = array<i64: 16, 32>}]} {
    %c0 = arith.constant 0 : index
    %c0_0 = arith.constant 0 : index
    %0 = vector.load %arg1[%c0, %c0_0] : memref<16x32xbf16, #tpu.memory_space<vmem>>, vector<16x32xbf16>
    %1 = arith.extf %0 : vector<16x32xbf16> to vector<16x32xf32>
    %cst = arith.constant dense<0.000000e+00> : vector<16xf32>
    %2 = vector.multi_reduction <add>, %1, %cst [1] : vector<16x32xf32> to vector<16xf32>
    %3 = vector.shape_cast %2 : vector<16xf32> to vector<16x1xf32>
    %cst_1 = arith.constant 3.200000e+01 : f32
    %4 = vector.broadcast %cst_1 : f32 to vector<16x1xf32>
    %5 = arith.divf %3, %4 : vector<16x1xf32>
    %6 = vector.broadcast %5 : vector<16x1xf32> to vector<16x32xf32>
    %7 = arith.subf %1, %6 : vector<16x32xf32>
    %8 = arith.mulf %7, %7 : vector<16x32xf32>
    %cst_2 = arith.constant dense<0.000000e+00> : vector<16xf32>
    %9 = vector.multi_reduction <add>, %8, %cst_2 [1] : vector<16x32xf32> to vector<16xf32>
    %10 = vector.shape_cast %9 : vector<16xf32> to vector<16x1xf32>
    %cst_3 = arith.constant 3.200000e+01 : f32
    %11 = vector.broadcast %cst_3 : f32 to vector<16x1xf32>
    %12 = arith.divf %10, %11 : vector<16x1xf32>
    %13 = vector.broadcast %5 : vector<16x1xf32> to vector<16x32xf32>
    %14 = arith.subf %1, %13 : vector<16x32xf32>
    %cst_4 = arith.constant 9.99999974E-6 : f32
    %15 = vector.broadcast %cst_4 : f32 to vector<16x1xf32>
    %16 = arith.addf %12, %15 : vector<16x1xf32>
    %17 = math.rsqrt %16 : vector<16x1xf32>
    %18 = vector.broadcast %17 : vector<16x1xf32> to vector<16x32xf32>
    %19 = arith.mulf %14, %18 : vector<16x32xf32>
    %c0_5 = arith.constant 0 : index
    %c0_6 = arith.constant 0 : index
    %20 = vector.load %arg2[%c0_5, %c0_6] : memref<1x32xf32, #tpu.memory_space<vmem>>, vector<1x32xf32>
    %21 = vector.broadcast %20 : vector<1x32xf32> to vector<16x32xf32>
    %22 = arith.mulf %19, %21 : vector<16x32xf32>
    %c0_7 = arith.constant 0 : index
    %c0_8 = arith.constant 0 : index
    %23 = vector.load %arg3[%c0_7, %c0_8] : memref<1x32xf32, #tpu.memory_space<vmem>>, vector<1x32xf32>
    %24 = vector.broadcast %23 : vector<1x32xf32> to vector<16x32xf32>
    %25 = arith.addf %22, %24 : vector<16x32xf32>
    %26 = arith.truncf %25 : vector<16x32xf32> to vector<16x32xbf16>
    %c0_9 = arith.constant 0 : index
    %c0_10 = arith.constant 0 : index
    %27 = vector.load %arg4[%c0_9, %c0_10] : memref<16x32xbf16, #tpu.memory_space<vmem>>, vector<16x32xbf16>
    tpu.vector_store %arg4[%c0_9, %c0_10], %26 {strides = array<i32>} : memref<16x32xbf16, #tpu.memory_space<vmem>>, vector<16x32xbf16>,
    return
  }
  func.func @transform_0(%arg0: i32) -> (i32, i32) {
    %c0_i32 = arith.constant 0 : i32
    %c0_i32_0 = arith.constant 0 : i32
    return %arg0, %c0_i32 : i32, i32
  }
  func.func @transform_1(%arg0: i32) -> (i32, i32) {
    %c0_i32 = arith.constant 0 : i32
    %c0_i32_0 = arith.constant 0 : i32
    %c0_i32_1 = arith.constant 0 : i32
    return %c0_i32, %c0_i32_0 : i32, i32
  }
  func.func @transform_2(%arg0: i32) -> (i32, i32) {
    %c0_i32 = arith.constant 0 : i32
    %c0_i32_0 = arith.constant 0 : i32
    %c0_i32_1 = arith.constant 0 : i32
    return %c0_i32, %c0_i32_0 : i32, i32
  }
  func.func @transform_3(%arg0: i32) -> (i32, i32) {
    %c0_i32 = arith.constant 0 : i32
    %c0_i32_0 = arith.constant 0 : i32
    return %arg0, %c0_i32 : i32, i32
  }
}

module attributes {stable_mosaic.version = 11 : i64} {
  func.func @_linear_kernel(%arg0: i32, %arg1: i32, %arg2: i32, %arg3: memref<16x128xbf16, #tpu.memory_space<vmem>>, %arg4: memref<128x32xbf16, #tpu.memory_space<vmem>>, %arg5: memref<1x32xf32, #tpu.memory_space<vmem>>, %arg6: memref<16x32xbf16, #tpu.memory_space<vmem>>, %arg7: memref<16x32xbf16, #tpu.memory_space<vmem>>, %arg8: memref<16x32xf32, #tpu.memory_space<vmem>>) attributes {dimension_semantics = [#tpu.dimension_semantics<parallel>, #tpu.dimension_semantics<parallel>, #tpu.dimension_semantics<arbitrary>], iteration_bounds = array<i64: 1, 1, 1>, scalar_prefetch = 0 : i64, scratch_operands = 1 : i64, tpu.core_type = #tpu.core_type<tc>, window_params = [{transform_indices = @transform_0, window_bounds = array<i64: 16, 128>}, {transform_indices = @transform_1, window_bounds = array<i64: 128, 32>}, {transform_indices = @transform_2, window_bounds = array<i64: 1, 32>}, {transform_indices = @transform_3, window_bounds = array<i64: 16, 32>}, {transform_indices = @transform_4, window_bounds = array<i64: 16, 32>}]} {
    %c0_i32 = arith.constant 0 : i32
    %0 = arith.cmpi eq, %arg2, %c0_i32 : i32
    %1 = arith.extui %0 : i1 to i32
    %c0_i32_0 = arith.constant 0 : i32
    %2 = arith.cmpi ne, %1, %c0_i32_0 : i32
    scf.if %2 {
      %cst_10 = arith.constant 0.000000e+00 : f32
      %12 = vector.broadcast %cst_10 : f32 to vector<16x32xf32>
      %c0_11 = arith.constant 0 : index
      %c0_12 = arith.constant 0 : index
      %13 = vector.load %arg8[%c0_11, %c0_12] : memref<16x32xf32, #tpu.memory_space<vmem>>, vector<16x32xf32>
      tpu.vector_store %arg8[%c0_11, %c0_12], %12 {strides = array<i32>} : memref<16x32xf32, #tpu.memory_space<vmem>>, vector<16x32xf32>,
    } else {
    }
    %c0 = arith.constant 0 : index
    %c0_1 = arith.constant 0 : index
    %3 = vector.load %arg8[%c0, %c0_1] : memref<16x32xf32, #tpu.memory_space<vmem>>, vector<16x32xf32>
    %c0_2 = arith.constant 0 : index
    %c0_3 = arith.constant 0 : index
    %4 = vector.load %arg3[%c0_2, %c0_3] : memref<16x128xbf16, #tpu.memory_space<vmem>>, vector<16x128xbf16>
    %c0_4 = arith.constant 0 : index
    %c0_5 = arith.constant 0 : index
    %5 = vector.load %arg4[%c0_4, %c0_5] : memref<128x32xbf16, #tpu.memory_space<vmem>>, vector<128x32xbf16>
    %cst = arith.constant dense<0.000000e+00> : vector<16x32xf32>
    %6 = tpu.matmul %4, %5, %cst {dimension_numbers = #tpu.dot_dimension_numbers<[1], [0], [0], [1], [0, 0, 1, 1], [], []>} : vector<16x128xbf16>, vector<128x32xbf16>, vector<16x32xf32> -> vector<16x32xf32>
    %7 = arith.addf %3, %6 : vector<16x32xf32>
    %c0_6 = arith.constant 0 : index
    %c0_7 = arith.constant 0 : index
    %8 = vector.load %arg8[%c0_6, %c0_7] : memref<16x32xf32, #tpu.memory_space<vmem>>, vector<16x32xf32>
    tpu.vector_store %arg8[%c0_6, %c0_7], %7 {strides = array<i32>} : memref<16x32xf32, #tpu.memory_space<vmem>>, vector<16x32xf32>,
    %c0_i32_8 = arith.constant 0 : i32
    %9 = arith.cmpi eq, %arg2, %c0_i32_8 : i32
    %10 = arith.extui %9 : i1 to i32
    %c0_i32_9 = arith.constant 0 : i32
    %11 = arith.cmpi ne, %10, %c0_i32_9 : i32
    scf.if %11 {
      %c0_10 = arith.constant 0 : index
      %c0_11 = arith.constant 0 : index
      %12 = vector.load %arg8[%c0_10, %c0_11] : memref<16x32xf32, #tpu.memory_space<vmem>>, vector<16x32xf32>
      %c0_12 = arith.constant 0 : index
      %c0_13 = arith.constant 0 : index
      %13 = vector.load %arg5[%c0_12, %c0_13] : memref<1x32xf32, #tpu.memory_space<vmem>>, vector<1x32xf32>
      %14 = vector.broadcast %13 : vector<1x32xf32> to vector<16x32xf32>
      %15 = arith.addf %12, %14 : vector<16x32xf32>
      %c0_14 = arith.constant 0 : index
      %c0_15 = arith.constant 0 : index
      %16 = vector.load %arg6[%c0_14, %c0_15] : memref<16x32xbf16, #tpu.memory_space<vmem>>, vector<16x32xbf16>
      %17 = arith.extf %16 : vector<16x32xbf16> to vector<16x32xf32>
      %18 = arith.addf %15, %17 : vector<16x32xf32>
      %19 = arith.truncf %18 : vector<16x32xf32> to vector<16x32xbf16>
      %c0_16 = arith.constant 0 : index
      %c0_17 = arith.constant 0 : index
      %20 = vector.load %arg7[%c0_16, %c0_17] : memref<16x32xbf16, #tpu.memory_space<vmem>>, vector<16x32xbf16>
      tpu.vector_store %arg7[%c0_16, %c0_17], %19 {strides = array<i32>} : memref<16x32xbf16, #tpu.memory_space<vmem>>, vector<16x32xbf16>,
    } else {
    }
    return
  }
  func.func @transform_0(%arg0: i32, %arg1: i32, %arg2: i32) -> (i32, i32) {
    %c0_i32 = arith.constant 0 : i32
    return %arg0, %arg2 : i32, i32
  }
  func.func @transform_1(%arg0: i32, %arg1: i32, %arg2: i32) -> (i32, i32) {
    %c0_i32 = arith.constant 0 : i32
    return %arg2, %arg1 : i32, i32
  }
  func.func @transform_2(%arg0: i32, %arg1: i32, %arg2: i32) -> (i32, i32) {
    %c0_i32 = arith.constant 0 : i32
    %c0_i32_0 = arith.constant 0 : i32
    return %c0_i32, %arg1 : i32, i32
  }
  func.func @transform_3(%arg0: i32, %arg1: i32, %arg2: i32) -> (i32, i32) {
    %c0_i32 = arith.constant 0 : i32
    return %arg0, %arg1 : i32, i32
  }
  func.func @transform_4(%arg0: i32, %arg1: i32, %arg2: i32) -> (i32, i32) {
    %c0_i32 = arith.constant 0 : i32
    return %arg0, %arg1 : i32, i32
  }
}

module attributes {stable_mosaic.version = 11 : i64} {
  func.func @_linear_kernel(%arg0: i32, %arg1: i32, %arg2: i32, %arg3: memref<2x256xbf16, #tpu.memory_space<vmem>>, %arg4: memref<256x128xbf16, #tpu.memory_space<vmem>>, %arg5: memref<1x128xf32, #tpu.memory_space<vmem>>, %arg6: memref<2x128xf32, #tpu.memory_space<vmem>>, %arg7: memref<2x128xf32, #tpu.memory_space<vmem>>) attributes {dimension_semantics = [#tpu.dimension_semantics<parallel>, #tpu.dimension_semantics<parallel>, #tpu.dimension_semantics<arbitrary>], iteration_bounds = array<i64: 1, 1, 1>, scalar_prefetch = 0 : i64, scratch_operands = 1 : i64, tpu.core_type = #tpu.core_type<tc>, window_params = [{transform_indices = @transform_0, window_bounds = array<i64: 2, 256>}, {transform_indices = @transform_1, window_bounds = array<i64: 256, 128>}, {transform_indices = @transform_2, window_bounds = array<i64: 1, 128>}, {transform_indices = @transform_3, window_bounds = array<i64: 2, 128>}]} {
    %c0_i32 = arith.constant 0 : i32
    %0 = arith.cmpi eq, %arg2, %c0_i32 : i32
    %1 = arith.extui %0 : i1 to i32
    %c0_i32_0 = arith.constant 0 : i32
    %2 = arith.cmpi ne, %1, %c0_i32_0 : i32
    scf.if %2 {
      %cst_10 = arith.constant 0.000000e+00 : f32
      %12 = vector.broadcast %cst_10 : f32 to vector<2x128xf32>
      %c0_11 = arith.constant 0 : index
      %c0_12 = arith.constant 0 : index
      %13 = vector.load %arg7[%c0_11, %c0_12] : memref<2x128xf32, #tpu.memory_space<vmem>>, vector<2x128xf32>
      tpu.vector_store %arg7[%c0_11, %c0_12], %12 {strides = array<i32>} : memref<2x128xf32, #tpu.memory_space<vmem>>, vector<2x128xf32>,
    } else {
    }
    %c0 = arith.constant 0 : index
    %c0_1 = arith.constant 0 : index
    %3 = vector.load %arg7[%c0, %c0_1] : memref<2x128xf32, #tpu.memory_space<vmem>>, vector<2x128xf32>
    %c0_2 = arith.constant 0 : index
    %c0_3 = arith.constant 0 : index
    %4 = vector.load %arg3[%c0_2, %c0_3] : memref<2x256xbf16, #tpu.memory_space<vmem>>, vector<2x256xbf16>
    %c0_4 = arith.constant 0 : index
    %c0_5 = arith.constant 0 : index
    %5 = vector.load %arg4[%c0_4, %c0_5] : memref<256x128xbf16, #tpu.memory_space<vmem>>, vector<256x128xbf16>
    %cst = arith.constant dense<0.000000e+00> : vector<2x128xf32>
    %6 = tpu.matmul %4, %5, %cst {dimension_numbers = #tpu.dot_dimension_numbers<[1], [0], [0], [1], [0, 0, 1, 1], [], []>} : vector<2x256xbf16>, vector<256x128xbf16>, vector<2x128xf32> -> vector<2x128xf32>
    %7 = arith.addf %3, %6 : vector<2x128xf32>
    %c0_6 = arith.constant 0 : index
    %c0_7 = arith.constant 0 : index
    %8 = vector.load %arg7[%c0_6, %c0_7] : memref<2x128xf32, #tpu.memory_space<vmem>>, vector<2x128xf32>
    tpu.vector_store %arg7[%c0_6, %c0_7], %7 {strides = array<i32>} : memref<2x128xf32, #tpu.memory_space<vmem>>, vector<2x128xf32>,
    %c0_i32_8 = arith.constant 0 : i32
    %9 = arith.cmpi eq, %arg2, %c0_i32_8 : i32
    %10 = arith.extui %9 : i1 to i32
    %c0_i32_9 = arith.constant 0 : i32
    %11 = arith.cmpi ne, %10, %c0_i32_9 : i32
    scf.if %11 {
      %c0_10 = arith.constant 0 : index
      %c0_11 = arith.constant 0 : index
      %12 = vector.load %arg7[%c0_10, %c0_11] : memref<2x128xf32, #tpu.memory_space<vmem>>, vector<2x128xf32>
      %c0_12 = arith.constant 0 : index
      %c0_13 = arith.constant 0 : index
      %13 = vector.load %arg5[%c0_12, %c0_13] : memref<1x128xf32, #tpu.memory_space<vmem>>, vector<1x128xf32>
      %14 = vector.broadcast %13 : vector<1x128xf32> to vector<2x128xf32>
      %15 = arith.addf %12, %14 : vector<2x128xf32>
      %c0_14 = arith.constant 0 : index
      %c0_15 = arith.constant 0 : index
      %16 = vector.load %arg6[%c0_14, %c0_15] : memref<2x128xf32, #tpu.memory_space<vmem>>, vector<2x128xf32>
      tpu.vector_store %arg6[%c0_14, %c0_15], %15 {strides = array<i32>} : memref<2x128xf32, #tpu.memory_space<vmem>>, vector<2x128xf32>,
    } else {
    }
    return
  }
  func.func @transform_0(%arg0: i32, %arg1: i32, %arg2: i32) -> (i32, i32) {
    %c0_i32 = arith.constant 0 : i32
    return %arg0, %arg2 : i32, i32
  }
  func.func @transform_1(%arg0: i32, %arg1: i32, %arg2: i32) -> (i32, i32) {
    %c0_i32 = arith.constant 0 : i32
    return %arg2, %arg1 : i32, i32
  }
  func.func @transform_2(%arg0: i32, %arg1: i32, %arg2: i32) -> (i32, i32) {
    %c0_i32 = arith.constant 0 : i32
    %c0_i32_0 = arith.constant 0 : i32
    return %c0_i32, %arg1 : i32, i32
  }
  func.func @transform_3(%arg0: i32, %arg1: i32, %arg2: i32) -> (i32, i32) {
    %c0_i32 = arith.constant 0 : i32
    return %arg0, %arg1 : i32, i32
  }
}

</mosaic_0001>

<llo_original>
// kernel: forward.14
$region0: #{forward.14}
  #allocation0 [shape = 'u32[]', space=smem, size = 0x4, offset = 0x4, fixed_abs, tag = 'smem constant byte address 0x4 - core index']
  #allocation1 [shape = 'u32[144,128]{1,0:T(1,128)}', space=vmem, size = 0x12000, scoped, tag = 'internal scratch']
  #allocation2 [shape = 'f32[16,32]{1,0:T(8,128)}', space=vmem, size = 0x2000, scoped, tag = 'scratch operand']
  %s0 = inlined_call_operand.vmem [shape: bf16[16,32], index: 0, kind: input, shape index: {}]
  %s1 = inlined_call_operand.vmem [shape: bf16[32,32], index: 1, kind: input, shape index: {}]
  %s2 = inlined_call_operand.vmem [shape: f32[1,32], index: 2, kind: input, shape index: {}]
  %s3 = inlined_call_operand.vmem [shape: bf16[16,32], index: 3, kind: input, shape index: {}]
  %s4 = inlined_call_operand.vmem [shape: bf16[16,32], index: 4, kind: output, shape index: {}]
  %s5 = sld [smem:[#allocation0]]
  $region34: #{forward.14} parent=0
    _
  %s7 = ssub.s32 1, %s5
  %s8 = scalar_select 0, %s7, %s5
  // Predicated region
  $region2: #{forward.14} parent=0 // pred_check
    _
  $region3: #{forward.14} parent=0 // pred_check_branch
    %10 = sbr.rel (0) target = $region5
  $region4: #{forward.14} parent=0 // pred_region
    _
  $region5: #{forward.14} parent=0 // pred_fallthru
    _
  // Predicated region
  $region6: #{forward.14} parent=0 // pred_check
    _
  $region7: #{forward.14} parent=0 // pred_check_branch
    %12 = sbr.rel (0) target = $region9
  $region8: #{forward.14} parent=0 // pred_region
    _
  $region9: #{forward.14} parent=0 // pred_fallthru
    _
  // Predicated region
  $region10: #{forward.14} parent=0 // pred_check
    _
  $region11: #{forward.14} parent=0 // pred_check_branch
    %14 = sbr.rel (0) target = $region13
  $region12: #{forward.14} parent=0 // pred_region
    _
  $region13: #{forward.14} parent=0 // pred_fallthru
    _
  // Predicated region
  $region14: #{forward.14} parent=0 // pred_check
    _
  $region15: #{forward.14} parent=0 // pred_check_branch
    %16 = sbr.rel (0) target = $region17
  $region16: #{forward.14} parent=0 // pred_region
    _
  $region17: #{forward.14} parent=0 // pred_fallthru
    _
  %p18 = scmp.eq.s32.totalorder 0, 0
  // Predicated region
  $region18: #{forward.14} parent=0 // pred_check
    %p19 = pneg %p18
  $region19: #{forward.14} parent=0 // pred_check_branch
    %21 = sbr.rel (%p19) target = $region21
  $region20: #{forward.14} parent=0 // pred_region
    %vm22 = vcmask 261120
    %23 = vst.msk [vmem:[#allocation2] sm:$0xff] %vm22, 0.0
    %24 = vst.msk [vmem:[#allocation2 + $0x8] sm:$0xff] %vm22, 0.0
  $region21: #{forward.14} parent=0 // pred_fallthru
    _
  %v25 = vld [vmem:[#allocation2] sm:$0xff]
  %v26 = vld [vmem:[#allocation2 + $0x8] sm:$0xff]
  %v27 = vld [vmem:[%s0] sm:$0xf]
  %v28 = vld [vmem:[%s0 + $0x4] sm:$0xf]
  %v29 = vld [vmem:[%s1] sm:$0xf]
  %v30 = vld [vmem:[%s1 + $0x4] sm:$0xf]
  %v31 = vld [vmem:[%s1 + $0x8] sm:$0xf]
  %v32 = vld [vmem:[%s1 + $0xc] sm:$0xf]
  %v35 = vunpack.c.l.b16 %v27
  %v36 = vunpack.c.l.b16 %v28
  %v37 = vpack.c.b16 %v36, %v35
  %v42 = vunpack.c.l.b16 %v29
  %v43 = vunpack.c.l.b16 %v30
  %v44 = vunpack.c.l.b16 %v31
  %v45 = vunpack.c.l.b16 %v32
  %v46 = vpack.c.b16 %v43, %v42
  %v47 = vpack.c.b16 %v45, %v44
  %vm50 = vcmask 261120
  %v52 = vsel %vm50, %v37, 0
  %54 = vmatprep.subr.bf16.mxu0 0
  %55 = vmatpush1.bf16.msra.mxu0 %v46
  %56 = vmatprep.subr.bf16.mxu0 0
  %57 = vmatpush1.bf16.msra.mxu0 %v47
  %58 = vmatprep.subr.bf16.mxu0 0
  %59 = vmatpush1.bf16.msra.mxu0 0
  %60 = vmatprep.subr.bf16.mxu0 0
  %61 = vmatpush1.bf16.msra.mxu0 0
  %62 = vmatprep.subr.bf16.mxu0 0
  %63 = vmatpush1.bf16.msra.mxu0 0
  %64 = vmatprep.subr.bf16.mxu0 0
  %65 = vmatpush1.bf16.msra.mxu0 0
  %66 = vmatprep.subr.bf16.mxu0 0
  %67 = vmatpush1.bf16.msra.mxu0 0
  %68 = vmatprep.subr.bf16.mxu0 0
  %69 = vmatpush1.bf16.msra.mxu0 0
  %70 = vmatprep.subr.bf16.mxu0 0
  %71 = vmatpush1.bf16.msra.mxu0 0
  %72 = vmatprep.subr.bf16.mxu0 0
  %73 = vmatpush1.bf16.msra.mxu0 0
  %74 = vmatprep.subr.bf16.mxu0 0
  %75 = vmatpush1.bf16.msra.mxu0 0
  %76 = vmatprep.subr.bf16.mxu0 0
  %77 = vmatpush1.bf16.msra.mxu0 0
  %78 = vmatprep.subr.bf16.mxu0 0
  %79 = vmatpush1.bf16.msra.mxu0 0
  %80 = vmatprep.subr.bf16.mxu0 0
  %81 = vmatpush1.bf16.msra.mxu0 0
  %82 = vmatprep.subr.bf16.mxu0 0
  %83 = vmatpush1.bf16.msra.mxu0 0
  %84 = vmatprep.subr.bf16.mxu0 0
  %85 = vmatpush1.bf16.msra.mxu0 0
  %86 = vmatprep.mubr.bf16.mxu0 0
  %87 = vmatmul.mubr.bf16.gmra.mrb[0].mxu0 %v52
  %v88 = vpop.f32.mrb[0].mxu0
  %v89 = vadd.f32 0.0, %v88
  %v90 = vpop.f32.mrb[0].mxu0
  %v91 = vpop.f32.mrb[0].mxu0
  %v92 = vadd.f32 0.0, %v91
  %v93 = vpop.f32.mrb[0].mxu0
  %94 = vdwg.mxu0
  %v95 = vadd.f32 %v25, %v89
  %v96 = vadd.f32 %v26, %v92
  %97 = vst.msk [vmem:[#allocation2] sm:$0xff] %vm50, %v95
  %98 = vst.msk [vmem:[#allocation2 + $0x8] sm:$0xff] %vm50, %v96
  // Predicated region
  $region22: #{forward.14} parent=0 // pred_check
    %p99 = pneg %p18
  $region23: #{forward.14} parent=0 // pred_check_branch
    %101 = sbr.rel (%p99) target = $region25
  $region24: #{forward.14} parent=0 // pred_region
    %v102 = vld [vmem:[#allocation2] sm:$0xff]
    %v103 = vld [vmem:[#allocation2 + $0x8] sm:$0xff]
    %v104 = vld [vmem:[%s2] sm:$0x1]
    %v106 = vlaneseq
    %v107 = vshrl.u32 %v106, 7
    %v108 = vsub.s32 0, %v107
    %v109 = vrot.slane %v104, %v108
    %v111 = vadd.f32 %v102, %v109
    %v112 = vadd.f32 %v103, %v109
    %v113 = vld [vmem:[%s3] sm:$0xf]
    %v114 = vld [vmem:[%s3 + $0x4] sm:$0xf]
    %v115 = vunpack.c.l.bf16 %v113
    %v116 = vunpack.c.l.bf16 %v114
    %v117 = vadd.f32 %v111, %v115
    %v118 = vadd.f32 %v112, %v116
    %v119 = vpack.c.bf16 %v118, %v117
    %v121 = vunpack.c.l.b16 %v119
    %v122 = vunpack.c.h.b16 %v119
    %v123 = vpack.c.b16 %v121, %v121
    %v124 = vpack.c.b16 %v122, %v122
    %vm127 = vcmask 257024
    %128 = vst.msk [vmem:[%s4] sm:$0xf] %vm127, %v123
    %129 = vst.msk [vmem:[%s4 + $0x4] sm:$0xf] %vm127, %v124
  $region25: #{forward.14} parent=0 // pred_fallthru
    _
  // Predicated region
  $region26: #{forward.14} parent=0 // pred_check
    _
  $region27: #{forward.14} parent=0 // pred_check_branch
    %131 = sbr.rel (0) target = $region29
  $region28: #{forward.14} parent=0 // pred_region
    _
  $region29: #{forward.14} parent=0 // pred_fallthru
    _
  // Predicated region
  $region30: #{forward.14} parent=0 // pred_check
    _
  $region31: #{forward.14} parent=0 // pred_check_branch
    %133 = sbr.rel (0) target = $region33
  $region32: #{forward.14} parent=0 // pred_region
    _
  $region33: #{forward.14} parent=0 // pred_fallthru
    _

// kernel: forward.12
$region0: #{forward.12}
  #allocation0 [shape = 'u32[]', space=smem, size = 0x4, offset = 0x4, fixed_abs, tag = 'smem constant byte address 0x4 - core index']
  #allocation1 [shape = 'u32[144,128]{1,0:T(1,128)}', space=vmem, size = 0x12000, scoped, tag = 'internal scratch']
  %s0 = inlined_call_operand.vmem [shape: bf16[16,32], index: 0, kind: input, shape index: {}]
  %s1 = inlined_call_operand.vmem [shape: f32[1,32], index: 1, kind: input, shape index: {}]
  %s2 = inlined_call_operand.vmem [shape: f32[1,32], index: 2, kind: input, shape index: {}]
  %s3 = inlined_call_operand.vmem [shape: bf16[32,96], index: 3, kind: input, shape index: {}]
  %s4 = inlined_call_operand.vmem [shape: f32[1,96], index: 4, kind: input, shape index: {}]
  %s5 = inlined_call_operand.vmem [shape: bf16[16,96], index: 5, kind: output, shape index: {}]
  %s6 = sld [smem:[#allocation0]]
  $region30: #{forward.12} parent=0
    _
  %s8 = ssub.s32 1, %s6
  %s9 = scalar_select 0, %s8, %s6
  // Predicated region
  $region2: #{forward.12} parent=0 // pred_check
    _
  $region3: #{forward.12} parent=0 // pred_check_branch
    %11 = sbr.rel (0) target = $region5
  $region4: #{forward.12} parent=0 // pred_region
    _
  $region5: #{forward.12} parent=0 // pred_fallthru
    _
  // Predicated region
  $region6: #{forward.12} parent=0 // pred_check
    _
  $region7: #{forward.12} parent=0 // pred_check_branch
    %13 = sbr.rel (0) target = $region9
  $region8: #{forward.12} parent=0 // pred_region
    _
  $region9: #{forward.12} parent=0 // pred_fallthru
    _
  // Predicated region
  $region10: #{forward.12} parent=0 // pred_check
    _
  $region11: #{forward.12} parent=0 // pred_check_branch
    %15 = sbr.rel (0) target = $region13
  $region12: #{forward.12} parent=0 // pred_region
    _
  $region13: #{forward.12} parent=0 // pred_fallthru
    _
  // Predicated region
  $region14: #{forward.12} parent=0 // pred_check
    _
  $region15: #{forward.12} parent=0 // pred_check_branch
    %17 = sbr.rel (0) target = $region17
  $region16: #{forward.12} parent=0 // pred_region
    _
  $region17: #{forward.12} parent=0 // pred_fallthru
    _
  // Predicated region
  $region18: #{forward.12} parent=0 // pred_check
    _
  $region19: #{forward.12} parent=0 // pred_check_branch
    %19 = sbr.rel (0) target = $region21
  $region20: #{forward.12} parent=0 // pred_region
    _
  $region21: #{forward.12} parent=0 // pred_fallthru
    _
  %v21 = vld [vmem:[%s0] sm:$0xf]
  %v22 = vld [vmem:[%s0 + $0x4] sm:$0xf]
  %v23 = vunpack.c.l.bf16 %v21
  %v24 = vunpack.c.l.bf16 %v22
  %vm25 = vcmask 261120
  %v26 = vsel %vm25, %v23, 0.0
  %27 = vadd.xlane.f32.xlu0 %v26
  %v28 = vpop.xlane.xlu0 %27
  %v29 = vsel %vm25, %v24, 0.0
  %30 = vadd.xlane.f32.xlu0 %v29
  %v31 = vpop.xlane.xlu0 %30
  %v32 = vrcp.pop 32.0
  %v33 = vmul.f32 %v28, %v32
  %v34 = vmul.f32 %v31, %v32
  %v35 = vsub.f32 %v23, %v33
  %v36 = vsub.f32 %v24, %v34
  %v37 = vmul.f32 %v35, %v35
  %v38 = vmul.f32 %v36, %v36
  %v39 = vsel %vm25, %v37, 0.0
  %40 = vadd.xlane.f32.xlu0 %v39
  %v41 = vpop.xlane.xlu0 %40
  %v42 = vsel %vm25, %v38, 0.0
  %43 = vadd.xlane.f32.xlu0 %v42
  %v44 = vpop.xlane.xlu0 %43
  %v45 = vmul.f32 %v41, %v32
  %v46 = vmul.f32 %v44, %v32
  %v47 = vadd.f32 %v45, 1e-05
  %v48 = vadd.f32 %v46, 1e-05
  %v49 = vrsqrt.pop %v47
  %v50 = vrsqrt.pop %v48
  %v51 = vmul.f32 %v35, %v49
  %v52 = vmul.f32 %v36, %v50
  %v53 = vld [vmem:[%s1] sm:$0x1]
  %v55 = vlaneseq
  %v56 = vshrl.u32 %v55, 7
  %v57 = vsub.s32 0, %v56
  %v58 = vrot.slane %v53, %v57
  %v60 = vmul.f32 %v51, %v58
  %v61 = vmul.f32 %v52, %v58
  %v62 = vld [vmem:[%s2] sm:$0x1]
  %v64 = vlaneseq
  %v65 = vshrl.u32 %v64, 7
  %v66 = vsub.s32 0, %v65
  %v67 = vrot.slane %v62, %v66
  %v69 = vadd.f32 %v60, %v67
  %v70 = vadd.f32 %v61, %v67
  %v71 = vpack.c.bf16 %v70, %v69
  %v72 = vld [vmem:[%s3] sm:$0xf]
  %v73 = vld [vmem:[%s3 + $0x4] sm:$0xf]
  %v74 = vld [vmem:[%s3 + $0x8] sm:$0xf]
  %v75 = vld [vmem:[%s3 + $0xc] sm:$0xf]
  %v76 = vld [vmem:[%s4] sm:$0x1]
  %v78 = vlaneseq
  %v79 = vshrl.u32 %v78, 7
  %v80 = vsub.s32 0, %v79
  %v81 = vrot.slane %v76, %v80
  %v87 = vunpack.c.l.b16 %v72
  %v88 = vunpack.c.l.b16 %v73
  %v89 = vunpack.c.l.b16 %v74
  %v90 = vunpack.c.l.b16 %v75
  %v91 = vpack.c.b16 %v88, %v87
  %v92 = vpack.c.b16 %v90, %v89
  %v96 = vsel %vm25, %v71, 0
  %98 = vmatprep.subr.bf16.mxu0 0
  %99 = vmatpush1.bf16.msra.mxu0 %v91
  %100 = vmatprep.subr.bf16.mxu0 0
  %101 = vmatpush1.bf16.msra.mxu0 %v92
  %102 = vmatprep.subr.bf16.mxu0 0
  %103 = vmatpush1.bf16.msra.mxu0 0
  %104 = vmatprep.subr.bf16.mxu0 0
  %105 = vmatpush1.bf16.msra.mxu0 0
  %106 = vmatprep.subr.bf16.mxu0 0
  %107 = vmatpush1.bf16.msra.mxu0 0
  %108 = vmatprep.subr.bf16.mxu0 0
  %109 = vmatpush1.bf16.msra.mxu0 0
  %110 = vmatprep.subr.bf16.mxu0 0
  %111 = vmatpush1.bf16.msra.mxu0 0
  %112 = vmatprep.subr.bf16.mxu0 0
  %113 = vmatpush1.bf16.msra.mxu0 0
  %114 = vmatprep.subr.bf16.mxu0 0
  %115 = vmatpush1.bf16.msra.mxu0 0
  %116 = vmatprep.subr.bf16.mxu0 0
  %117 = vmatpush1.bf16.msra.mxu0 0
  %118 = vmatprep.subr.bf16.mxu0 0
  %119 = vmatpush1.bf16.msra.mxu0 0
  %120 = vmatprep.subr.bf16.mxu0 0
  %121 = vmatpush1.bf16.msra.mxu0 0
  %122 = vmatprep.subr.bf16.mxu0 0
  %123 = vmatpush1.bf16.msra.mxu0 0
  %124 = vmatprep.subr.bf16.mxu0 0
  %125 = vmatpush1.bf16.msra.mxu0 0
  %126 = vmatprep.subr.bf16.mxu0 0
  %127 = vmatpush1.bf16.msra.mxu0 0
  %128 = vmatprep.subr.bf16.mxu0 0
  %129 = vmatpush1.bf16.msra.mxu0 0
  %130 = vmatprep.mubr.bf16.mxu0 0
  %131 = vmatmul.mubr.bf16.gmra.mrb[0].mxu0 %v96
  %v132 = vpop.f32.mrb[0].mxu0
  %v133 = vadd.f32 %v81, %v132
  %v134 = vpop.f32.mrb[0].mxu0
  %v135 = vpop.f32.mrb[0].mxu0
  %v136 = vadd.f32 %v81, %v135
  %v137 = vpop.f32.mrb[0].mxu0
  %138 = vdwg.mxu0
  %v139 = vpack.c.bf16 %v136, %v133
  %v141 = vunpack.c.l.b16 %v139
  %v142 = vunpack.c.h.b16 %v139
  %v143 = vpack.c.b16 %v141, %v141
  %v144 = vpack.c.b16 %v142, %v142
  %vm147 = vcmask 781312
  %148 = vst.msk [vmem:[%s5] sm:$0xf] %vm147, %v143
  %149 = vst.msk [vmem:[%s5 + $0x4] sm:$0xf] %vm147, %v144
  // Predicated region
  $region22: #{forward.12} parent=0 // pred_check
    _
  $region23: #{forward.12} parent=0 // pred_check_branch
    %151 = sbr.rel (0) target = $region25
  $region24: #{forward.12} parent=0 // pred_region
    _
  $region25: #{forward.12} parent=0 // pred_fallthru
    _
  // Predicated region
  $region26: #{forward.12} parent=0 // pred_check
    _
  $region27: #{forward.12} parent=0 // pred_check_branch
    %153 = sbr.rel (0) target = $region29
  $region28: #{forward.12} parent=0 // pred_region
    _
  $region29: #{forward.12} parent=0 // pred_fallthru
    _

// kernel: forward.15
$region0: #{forward.15}
  #allocation0 [shape = 'u32[]', space=smem, size = 0x4, offset = 0x4, fixed_abs, tag = 'smem constant byte address 0x4 - core index']
  #allocation1 [shape = 'u32[144,128]{1,0:T(1,128)}', space=vmem, size = 0x12000, scoped, tag = 'internal scratch']
  %s0 = inlined_call_operand.vmem [shape: bf16[16,32], index: 0, kind: input, shape index: {}]
  %s1 = inlined_call_operand.vmem [shape: f32[1,32], index: 1, kind: input, shape index: {}]
  %s2 = inlined_call_operand.vmem [shape: f32[1,32], index: 2, kind: input, shape index: {}]
  %s3 = inlined_call_operand.vmem [shape: bf16[32,128], index: 3, kind: input, shape index: {}]
  %s4 = inlined_call_operand.vmem [shape: f32[1,128], index: 4, kind: input, shape index: {}]
  %s5 = inlined_call_operand.vmem [shape: bf16[16,128], index: 5, kind: output, shape index: {}]
  %s6 = sld [smem:[#allocation0]]
  $region30: #{forward.15} parent=0
    _
  %s8 = ssub.s32 1, %s6
  %s9 = scalar_select 0, %s8, %s6
  // Predicated region
  $region2: #{forward.15} parent=0 // pred_check
    _
  $region3: #{forward.15} parent=0 // pred_check_branch
    %11 = sbr.rel (0) target = $region5
  $region4: #{forward.15} parent=0 // pred_region
    _
  $region5: #{forward.15} parent=0 // pred_fallthru
    _
  // Predicated region
  $region6: #{forward.15} parent=0 // pred_check
    _
  $region7: #{forward.15} parent=0 // pred_check_branch
    %13 = sbr.rel (0) target = $region9
  $region8: #{forward.15} parent=0 // pred_region
    _
  $region9: #{forward.15} parent=0 // pred_fallthru
    _
  // Predicated region
  $region10: #{forward.15} parent=0 // pred_check
    _
  $region11: #{forward.15} parent=0 // pred_check_branch
    %15 = sbr.rel (0) target = $region13
  $region12: #{forward.15} parent=0 // pred_region
    _
  $region13: #{forward.15} parent=0 // pred_fallthru
    _
  // Predicated region
  $region14: #{forward.15} parent=0 // pred_check
    _
  $region15: #{forward.15} parent=0 // pred_check_branch
    %17 = sbr.rel (0) target = $region17
  $region16: #{forward.15} parent=0 // pred_region
    _
  $region17: #{forward.15} parent=0 // pred_fallthru
    _
  // Predicated region
  $region18: #{forward.15} parent=0 // pred_check
    _
  $region19: #{forward.15} parent=0 // pred_check_branch
    %19 = sbr.rel (0) target = $region21
  $region20: #{forward.15} parent=0 // pred_region
    _
  $region21: #{forward.15} parent=0 // pred_fallthru
    _
  %v21 = vld [vmem:[%s0] sm:$0xf]
  %v22 = vld [vmem:[%s0 + $0x4] sm:$0xf]
  %v23 = vunpack.c.l.bf16 %v21
  %v24 = vunpack.c.l.bf16 %v22
  %vm25 = vcmask 261120
  %v26 = vsel %vm25, %v23, 0.0
  %27 = vadd.xlane.f32.xlu0 %v26
  %v28 = vpop.xlane.xlu0 %27
  %v29 = vsel %vm25, %v24, 0.0
  %30 = vadd.xlane.f32.xlu0 %v29
  %v31 = vpop.xlane.xlu0 %30
  %v32 = vrcp.pop 32.0
  %v33 = vmul.f32 %v28, %v32
  %v34 = vmul.f32 %v31, %v32
  %v35 = vsub.f32 %v23, %v33
  %v36 = vsub.f32 %v24, %v34
  %v37 = vmul.f32 %v35, %v35
  %v38 = vmul.f32 %v36, %v36
  %v39 = vsel %vm25, %v37, 0.0
  %40 = vadd.xlane.f32.xlu0 %v39
  %v41 = vpop.xlane.xlu0 %40
  %v42 = vsel %vm25, %v38, 0.0
  %43 = vadd.xlane.f32.xlu0 %v42
  %v44 = vpop.xlane.xlu0 %43
  %v45 = vmul.f32 %v41, %v32
  %v46 = vmul.f32 %v44, %v32
  %v47 = vadd.f32 %v45, 1e-05
  %v48 = vadd.f32 %v46, 1e-05
  %v49 = vrsqrt.pop %v47
  %v50 = vrsqrt.pop %v48
  %v51 = vmul.f32 %v35, %v49
  %v52 = vmul.f32 %v36, %v50
  %v53 = vld [vmem:[%s1] sm:$0x1]
  %v55 = vlaneseq
  %v56 = vshrl.u32 %v55, 7
  %v57 = vsub.s32 0, %v56
  %v58 = vrot.slane %v53, %v57
  %v60 = vmul.f32 %v51, %v58
  %v61 = vmul.f32 %v52, %v58
  %v62 = vld [vmem:[%s2] sm:$0x1]
  %v64 = vlaneseq
  %v65 = vshrl.u32 %v64, 7
  %v66 = vsub.s32 0, %v65
  %v67 = vrot.slane %v62, %v66
  %v69 = vadd.f32 %v60, %v67
  %v70 = vadd.f32 %v61, %v67
  %v71 = vpack.c.bf16 %v70, %v69
  %v72 = vld [vmem:[%s3] sm:$0xf]
  %v73 = vld [vmem:[%s3 + $0x4] sm:$0xf]
  %v74 = vld [vmem:[%s3 + $0x8] sm:$0xf]
  %v75 = vld [vmem:[%s3 + $0xc] sm:$0xf]
  %v76 = vld [vmem:[%s4] sm:$0x1]
  %v78 = vlaneseq
  %v79 = vshrl.u32 %v78, 7
  %v80 = vsub.s32 0, %v79
  %v81 = vrot.slane %v76, %v80
  %v87 = vunpack.c.l.b16 %v72
  %v88 = vunpack.c.l.b16 %v73
  %v89 = vunpack.c.l.b16 %v74
  %v90 = vunpack.c.l.b16 %v75
  %v91 = vpack.c.b16 %v88, %v87
  %v92 = vpack.c.b16 %v90, %v89
  %v96 = vsel %vm25, %v71, 0
  %98 = vmatprep.subr.bf16.mxu0 0
  %99 = vmatpush1.bf16.msra.mxu0 %v91
  %100 = vmatprep.subr.bf16.mxu0 0
  %101 = vmatpush1.bf16.msra.mxu0 %v92
  %102 = vmatprep.subr.bf16.mxu0 0
  %103 = vmatpush1.bf16.msra.mxu0 0
  %104 = vmatprep.subr.bf16.mxu0 0
  %105 = vmatpush1.bf16.msra.mxu0 0
  %106 = vmatprep.subr.bf16.mxu0 0
  %107 = vmatpush1.bf16.msra.mxu0 0
  %108 = vmatprep.subr.bf16.mxu0 0
  %109 = vmatpush1.bf16.msra.mxu0 0
  %110 = vmatprep.subr.bf16.mxu0 0
  %111 = vmatpush1.bf16.msra.mxu0 0
  %112 = vmatprep.subr.bf16.mxu0 0
  %113 = vmatpush1.bf16.msra.mxu0 0
  %114 = vmatprep.subr.bf16.mxu0 0
  %115 = vmatpush1.bf16.msra.mxu0 0
  %116 = vmatprep.subr.bf16.mxu0 0
  %117 = vmatpush1.bf16.msra.mxu0 0
  %118 = vmatprep.subr.bf16.mxu0 0
  %119 = vmatpush1.bf16.msra.mxu0 0
  %120 = vmatprep.subr.bf16.mxu0 0
  %121 = vmatpush1.bf16.msra.mxu0 0
  %122 = vmatprep.subr.bf16.mxu0 0
  %123 = vmatpush1.bf16.msra.mxu0 0
  %124 = vmatprep.subr.bf16.mxu0 0
  %125 = vmatpush1.bf16.msra.mxu0 0
  %126 = vmatprep.subr.bf16.mxu0 0
  %127 = vmatpush1.bf16.msra.mxu0 0
  %128 = vmatprep.subr.bf16.mxu0 0
  %129 = vmatpush1.bf16.msra.mxu0 0
  %130 = vmatprep.mubr.bf16.mxu0 0
  %131 = vmatmul.mubr.bf16.gmra.mrb[0].mxu0 %v96
  %v132 = vpop.f32.mrb[0].mxu0
  %v133 = vadd.f32 %v81, %v132
  %v134 = vpop.f32.mrb[0].mxu0
  %v135 = vpop.f32.mrb[0].mxu0
  %v136 = vadd.f32 %v81, %v135
  %v137 = vpop.f32.mrb[0].mxu0
  %138 = vdwg.mxu0
  %v139 = vmul.f32 %v133, 0.5
  %v140 = vmul.f32 %v136, 0.5
  %v141 = vmul.f32 %v133, 0.044715
  %v142 = vmul.f32 %v136, 0.044715
  %v143 = vmul.f32 %v141, %v133
  %v144 = vmul.f32 %v142, %v136
  %v145 = vmul.f32 %v143, %v133
  %v146 = vmul.f32 %v144, %v136
  %v147 = vadd.f32 %v133, %v145
  %v148 = vadd.f32 %v136, %v146
  %v149 = vmul.f32 %v147, 0.7978846
  %v150 = vmul.f32 %v148, 0.7978846
  %v151 = vtanh.pop %v149
  %v152 = vtanh.pop %v150
  %v153 = vadd.f32 %v151, 1.0
  %v154 = vadd.f32 %v152, 1.0
  %v155 = vmul.f32 %v139, %v153
  %v156 = vmul.f32 %v140, %v154
  %v157 = vpack.c.bf16 %v156, %v155
  %v159 = vunpack.c.l.b16 %v157
  %v160 = vunpack.c.h.b16 %v157
  %v161 = vpack.c.b16 %v159, %v159
  %v162 = vpack.c.b16 %v160, %v160
  %165 = vst [vmem:[%s5] sm:$0xf] %v161
  %166 = vst [vmem:[%s5 + $0x4] sm:$0xf] %v162
  // Predicated region
  $region22: #{forward.15} parent=0 // pred_check
    _
  $region23: #{forward.15} parent=0 // pred_check_branch
    %168 = sbr.rel (0) target = $region25
  $region24: #{forward.15} parent=0 // pred_region
    _
  $region25: #{forward.15} parent=0 // pred_fallthru
    _
  // Predicated region
  $region26: #{forward.15} parent=0 // pred_check
    _
  $region27: #{forward.15} parent=0 // pred_check_branch
    %170 = sbr.rel (0) target = $region29
  $region28: #{forward.15} parent=0 // pred_region
    _
  $region29: #{forward.15} parent=0 // pred_fallthru
    _

// kernel: forward.13
$region0: #{forward.13}
  #allocation0 [shape = 'u32[]', space=smem, size = 0x4, offset = 0x4, fixed_abs, tag = 'smem constant byte address 0x4 - core index']
  #allocation1 [shape = 'u32[144,128]{1,0:T(1,128)}', space=vmem, size = 0x12000, scoped, tag = 'internal scratch']
  %s0 = inlined_call_operand.vmem [shape: bf16[16,96], index: 0, kind: input, shape index: {}]
  %s1 = inlined_call_operand.vmem [shape: f32[2,1,8], index: 1, kind: input, shape index: {}]
  %s2 = inlined_call_operand.vmem [shape: bf16[16,32], index: 2, kind: output, shape index: {}]
  %s3 = sld [smem:[#allocation0]]
  $region41: #{forward.13} parent=0
    _
  %s5 = ssub.s32 1, %s3
  %s6 = scalar_select 0, %s5, %s3
  loop: start=0, step=1, limit=4
  $region2: #{forward.13} parent=0 // loop_pre_header
    _
  $region3: #{forward.13} parent=0 // loop_header
    %s8 = sphi 0, %s12
    %p9 = scmp.ge.s32.totalorder %s8, 4
    %s18 = sphi 0, %s20
    %s21 = sphi 0, %s18
    %s22 = sphi 0, %s21
    %s38 = sphi 0, %s22
    %s44 = sphi 0, %s46
    %s47 = sphi 0, %s44
    %s48 = sphi 0, %s47
    %s64 = sphi 0, %s48
    %s70 = sphi 0, %s72
    %s73 = sphi 0, %s70
    %s74 = sphi 0, %s73
    %s90 = sphi 0, %s74
  $region4: #{forward.13} parent=0 // loop_header_branch
    %11 = sbr.rel (%p9) target = $region8
  $region5: #{forward.13} parent=0 // loop_body
    %s13 = ssub.s32 %s8, 1
    %s14 = ssub.s32 %s8, 2
    %s15 = sadd.s32 %s8, 1
    %s16 = ssub.s32 %s8, %s15
    %p17 = scmp.eq.s32.totalorder %s16, 0
    %s19 = sadd.s32 %s18, 1
    %s20 = scalar_select %p17, %s18, %s19
    %p23 = pneg %p17
    %p24 = scmp.eq.s32.totalorder %s8, 1
    %p25 = por %p23, %p24
    %p26 = scmp.ne.s32.totalorder %s18, %s21
    %p27 = scmp.eq.s32.totalorder %s8, 0
    %p28 = por %p26, %p27
    %p29 = scmp.ne.s32.totalorder %s18, %s21
    %p30 = scmp.eq.s32.totalorder %s13, 1
    %p31 = por %p29, %p30
    %p32 = scmp.ne.s32.totalorder %s21, %s22
    %p33 = scmp.eq.s32.totalorder %s13, 0
    %p34 = por %p32, %p33
    %p35 = scmp.ne.s32.totalorder %s21, %s22
    %p36 = scmp.eq.s32.totalorder %s14, 1
    %p37 = por %p35, %p36
    %p39 = scmp.ne.s32.totalorder %s22, %s38
    %p40 = scmp.eq.s32.totalorder %s14, 0
    %p41 = por %p39, %p40
    %s42 = ssub.s32 %s8, %s15
    %p43 = scmp.eq.s32.totalorder %s42, 0
    %s45 = sadd.s32 %s44, 1
    %s46 = scalar_select %p43, %s44, %s45
    %p49 = pneg %p43
    %p50 = scmp.eq.s32.totalorder %s8, 1
    %p51 = por %p49, %p50
    %p52 = scmp.ne.s32.totalorder %s44, %s47
    %p53 = scmp.eq.s32.totalorder %s8, 0
    %p54 = por %p52, %p53
    %p55 = scmp.ne.s32.totalorder %s44, %s47
    %p56 = scmp.eq.s32.totalorder %s13, 1
    %p57 = por %p55, %p56
    %p58 = scmp.ne.s32.totalorder %s47, %s48
    %p59 = scmp.eq.s32.totalorder %s13, 0
    %p60 = por %p58, %p59
    %p61 = scmp.ne.s32.totalorder %s47, %s48
    %p62 = scmp.eq.s32.totalorder %s14, 1
    %p63 = por %p61, %p62
    %p65 = scmp.ne.s32.totalorder %s48, %s64
    %p66 = scmp.eq.s32.totalorder %s14, 0
    %p67 = por %p65, %p66
    %s68 = ssub.s32 %s8, %s15
    %p69 = scmp.eq.s32.totalorder %s68, 0
    %s71 = sadd.s32 %s70, 1
    %s72 = scalar_select %p69, %s70, %s71
    %p75 = pneg %p69
    %p76 = scmp.eq.s32.totalorder %s8, 1
    %p77 = por %p75, %p76
    %p78 = scmp.ne.s32.totalorder %s70, %s73
    %p79 = scmp.eq.s32.totalorder %s8, 0
    %p80 = por %p78, %p79
    %p81 = scmp.ne.s32.totalorder %s70, %s73
    %p82 = scmp.eq.s32.totalorder %s13, 1
    %p83 = por %p81, %p82
    %p84 = scmp.ne.s32.totalorder %s73, %s74
    %p85 = scmp.eq.s32.totalorder %s13, 0
    %p86 = por %p84, %p85
    %p87 = scmp.ne.s32.totalorder %s73, %s74
    %p88 = scmp.eq.s32.totalorder %s14, 1
    %p89 = por %p87, %p88
    %p91 = scmp.ne.s32.totalorder %s74, %s90
    %p92 = scmp.eq.s32.totalorder %s14, 0
    %p93 = por %p91, %p92
    %p94 = scmp.le.s32.totalorder 1, %s8
    %p95 = scmp.lt.s32.totalorder %s8, 3
    %p96 = pnand %p94, %p95
    %p97 = pneg %p96
    // Predicated region
    $region9: #{forward.13} parent=5 // pred_check
      _
    $region10: #{forward.13} parent=5 // pred_check_branch
      %99 = sbr.rel (%p96) target = $region12
    $region11: #{forward.13} parent=5 // pred_region
      %s100 = ssub.s32 %s8, 1
    $region12: #{forward.13} parent=5 // pred_fallthru
      _
    %p101 = scmp.lt.s32.totalorder %s8, 2
    // Predicated region
    $region13: #{forward.13} parent=5 // pred_check
      %p102 = pneg %p101
    $region14: #{forward.13} parent=5 // pred_check_branch
      %104 = sbr.rel (%p102) target = $region16
    $region15: #{forward.13} parent=5 // pred_region
      // Predicated region
      $region17: #{forward.13} parent=15 // pred_check
        %p105 = pneg %p28
      $region18: #{forward.13} parent=15 // pred_check_branch
        %107 = sbr.rel (%p105) target = $region20
      $region19: #{forward.13} parent=15 // pred_region
        %p108 = scmp.lt.s32.totalorder %s8, 1
        %s109 = scalar_select %p108, %s8, 1
        %s110 = smul.addr %s109, 4
        %s111 = scalar_lea.vmem %s0, %s110
      $region20: #{forward.13} parent=15 // pred_fallthru
        _
      // Predicated region
      $region21: #{forward.13} parent=15 // pred_check
        %p112 = pneg %p54
      $region22: #{forward.13} parent=15 // pred_check_branch
        %114 = sbr.rel (%p112) target = $region24
      $region23: #{forward.13} parent=15 // pred_region
        %p115 = scmp.lt.s32.totalorder %s8, 1
        %s116 = scalar_select %p115, %s8, 1
        %s117 = scalar_lea.vmem %s1, %s116
      $region24: #{forward.13} parent=15 // pred_fallthru
        _
    $region16: #{forward.13} parent=5 // pred_fallthru
      _
    %p118 = scmp.le.s32.totalorder 1, %s8
    %p119 = scmp.lt.s32.totalorder %s8, 3
    %p120 = pnand %p118, %p119
    %p121 = pneg %p120
    // Predicated region
    $region25: #{forward.13} parent=5 // pred_check
      _
    $region26: #{forward.13} parent=5 // pred_check_branch
      %123 = sbr.rel (%p120) target = $region28
    $region27: #{forward.13} parent=5 // pred_region
      %s124 = ssub.s32 %s8, 1
      %p125 = scmp.lt.s32.totalorder %s13, 1
      %s126 = scalar_select %p125, %s13, 1
      %s127 = smul.addr %s126, 4
      %s128 = scalar_lea.vmem %s0, %s127
      %p129 = pneg %p34
      %p130 = pneg %p31
      %p131 = scmp.lt.s32.totalorder %s13, 1
      %s132 = scalar_select %p131, %s13, 1
      %s133 = scalar_lea.vmem %s1, %s132
      %p134 = pneg %p60
      %p135 = pneg %p57
      %p136 = pneg %p86
      %p137 = pneg %p83
      %p138 = scmp.lt.s32.totalorder %s13, 1
      %s139 = scalar_select %p138, %s13, 1
      %s140 = smul.addr %s139, 4
      %s141 = scalar_lea.vmem %s2, %s140
      %p142 = scmp.lt.s32.totalorder %s13, 1
      %s143 = scalar_select %p142, %s13, 1
      %s144 = smul.addr %s143, 4
      %s145 = scalar_lea.vmem %s0, %s144
      %p146 = scmp.lt.s32.totalorder %s13, 1
      %s147 = scalar_select %p146, %s13, 1
      %s148 = scalar_lea.vmem %s1, %s147
      %p149 = scmp.lt.s32.totalorder %s13, 1
      %s150 = scalar_select %p149, %s13, 1
      %s151 = smul.addr %s150, 4
      %s152 = scalar_lea.vmem %s2, %s151
      %v154 = vld [vmem:[%s145] sm:$0xf]
      %v155 = vld [vmem:[%s148] sm:$0x1]
      %v156 = vlaneseq
      %v157 = vshrl.u32 %v156, 7
      %v158 = vlaneseq
      %v159 = vand.u32 %v158, 127
      %vm160 = vcmp.le.s32.totalorder %v159, %v157
      %vm161 = vcmp.gt.f32.partialorder %v155, 0.5
      %v162 = vsel %vm161, 1, 0
      %v163 = vlaneseq
      %v164 = vshrl.u32 %v163, 7
      %v165 = vsub.s32 0, %v164
      %v166 = vrot.slane %v162, %v165
      %vm167 = vcmp.eq.s32.totalorder %v166, 1
      %vm168 = vmand %vm160, %vm167
      %v170 = vunpack.c.l.b16 %v154
      %v171 = vpack.c.b16 %v170, %v170
      %172 = vrot.lane.b32.xlu0 %v171, 96
      %v173 = vpop.permute.xlu0 %172
      %vm174 = vcmask 130048
      %v176 = vsel %vm174, %v154, 0
      %v179 = vsel %vm174, %v173, 0
      %181 = vmatprep.subr.bf16.mxu0 0
      %182 = vmatpush1.bf16.xpose.msra.mxu0 %v179
      %183 = vmatprep.subr.bf16.mxu0 0
      %184 = vmatpush1.bf16.xpose.msra.mxu0 0
      %185 = vmatprep.subr.bf16.mxu0 0
      %186 = vmatpush1.bf16.xpose.msra.mxu0 0
      %187 = vmatprep.subr.bf16.mxu0 0
      %188 = vmatpush1.bf16.xpose.msra.mxu0 0
      %189 = vmatprep.subr.bf16.mxu0 0
      %190 = vmatpush1.bf16.xpose.msra.mxu0 0
      %191 = vmatprep.subr.bf16.mxu0 0
      %192 = vmatpush1.bf16.xpose.msra.mxu0 0
      %193 = vmatprep.subr.bf16.mxu0 0
      %194 = vmatpush1.bf16.xpose.msra.mxu0 0
      %195 = vmatprep.subr.bf16.mxu0 0
      %196 = vmatpush1.bf16.xpose.msra.mxu0 0
      %197 = vmatprep.subr.bf16.mxu0 0
      %198 = vmatpush1.bf16.xpose.msra.mxu0 0
      %199 = vmatprep.subr.bf16.mxu0 0
      %200 = vmatpush1.bf16.xpose.msra.mxu0 0
      %201 = vmatprep.subr.bf16.mxu0 0
      %202 = vmatpush1.bf16.xpose.msra.mxu0 0
      %203 = vmatprep.subr.bf16.mxu0 0
      %204 = vmatpush1.bf16.xpose.msra.mxu0 0
      %205 = vmatprep.subr.bf16.mxu0 0
      %206 = vmatpush1.bf16.xpose.msra.mxu0 0
      %207 = vmatprep.subr.bf16.mxu0 0
      %208 = vmatpush1.bf16.xpose.msra.mxu0 0
      %209 = vmatprep.subr.bf16.mxu0 0
      %210 = vmatpush1.bf16.xpose.msra.mxu0 0
      %211 = vmatprep.subr.bf16.mxu0 0
      %212 = vmatpush1.bf16.xpose.msra.mxu0 0
      %213 = vmatprep.mubr.bf16.mxu0 0
      %214 = vmatmul.mubr.bf16.gmra.mrb[0].mxu0 %v176
      %v215 = vpop.f32.mrb[0].mxu0
      %v216 = vadd.f32 0.0, %v215
      %v217 = vpop.f32.mrb[0].mxu0
      %v218 = vpop.f32.mrb[0].mxu0
      %v219 = vpop.f32.mrb[0].mxu0
      %220 = vdwg.mxu0
      %v221 = vmul.f32 %v216, 0.25
      %v222 = vsel %vm168, %v221, -1e+09
      %vm223 = vcmask 64512
      %v224 = vsel %vm223, %v222, -inf
      %225 = vmax.xlane.f32.xlu0 %v224
      %v226 = vpop.xlane.xlu0 %225
      %v227 = vsub.f32 %v222, %v226
      %v228 = vmul.f32 %v227, 1.442695
      %v229 = vpow.pop %v228
      %v230 = vsel %vm223, %v229, 0.0
      %231 = vadd.xlane.f32.xlu0 %v230
      %v232 = vpop.xlane.xlu0 %231
      %v233 = vpack.c.bf16 %v229, %v229
      %234 = vrot.lane.b32.xlu0 %v171, 64
      %v235 = vpop.permute.xlu0 %234
      %v237 = vsel %vm223, %v233, 0
      %vm239 = vcmask 1043456
      %v241 = vsel %vm239, %v235, 0
      %243 = vmatprep.subr.bf16.mxu0 0
      %244 = vmatpush1.bf16.msra.mxu0 %v241
      %245 = vmatprep.subr.bf16.mxu0 0
      %246 = vmatpush1.bf16.msra.mxu0 0
      %247 = vmatprep.subr.bf16.mxu0 0
      %248 = vmatpush1.bf16.msra.mxu0 0
      %249 = vmatprep.subr.bf16.mxu0 0
      %250 = vmatpush1.bf16.msra.mxu0 0
      %251 = vmatprep.subr.bf16.mxu0 0
      %252 = vmatpush1.bf16.msra.mxu0 0
      %253 = vmatprep.subr.bf16.mxu0 0
      %254 = vmatpush1.bf16.msra.mxu0 0
      %255 = vmatprep.subr.bf16.mxu0 0
      %256 = vmatpush1.bf16.msra.mxu0 0
      %257 = vmatprep.subr.bf16.mxu0 0
      %258 = vmatpush1.bf16.msra.mxu0 0
      %259 = vmatprep.subr.bf16.mxu0 0
      %260 = vmatpush1.bf16.msra.mxu0 0
      %261 = vmatprep.subr.bf16.mxu0 0
      %262 = vmatpush1.bf16.msra.mxu0 0
      %263 = vmatprep.subr.bf16.mxu0 0
      %264 = vmatpush1.bf16.msra.mxu0 0
      %265 = vmatprep.subr.bf16.mxu0 0
      %266 = vmatpush1.bf16.msra.mxu0 0
      %267 = vmatprep.subr.bf16.mxu0 0
      %268 = vmatpush1.bf16.msra.mxu0 0
      %269 = vmatprep.subr.bf16.mxu0 0
      %270 = vmatpush1.bf16.msra.mxu0 0
      %271 = vmatprep.subr.bf16.mxu0 0
      %272 = vmatpush1.bf16.msra.mxu0 0
      %273 = vmatprep.subr.bf16.mxu0 0
      %274 = vmatpush1.bf16.msra.mxu0 0
      %275 = vmatprep.mubr.bf16.mxu0 0
      %276 = vmatmul.mubr.bf16.gmra.mrb[0].mxu0 %v237
      %v277 = vpop.f32.mrb[0].mxu0
      %v278 = vadd.f32 0.0, %v277
      %v279 = vpop.f32.mrb[0].mxu0
      %v280 = vpop.f32.mrb[0].mxu0
      %v281 = vpop.f32.mrb[0].mxu0
      %282 = vdwg.mxu0
      %v283 = vrcp.pop %v232
      %v284 = vmul.f32 %v278, %v283
      %285 = vrot.lane.b32.xlu0 %v171, 112
      %v286 = vpop.permute.xlu0 %285
      %287 = vrot.lane.b32.xlu0 %v171, 80
      %v288 = vpop.permute.xlu0 %287
      %v290 = vsel %vm174, %v286, 0
      %v293 = vsel %vm174, %v288, 0
      %295 = vmatprep.subr.bf16.mxu0 0
      %296 = vmatpush1.bf16.xpose.msra.mxu0 %v293
      %297 = vmatprep.subr.bf16.mxu0 0
      %298 = vmatpush1.bf16.xpose.msra.mxu0 0
      %299 = vmatprep.subr.bf16.mxu0 0
      %300 = vmatpush1.bf16.xpose.msra.mxu0 0
      %301 = vmatprep.subr.bf16.mxu0 0
      %302 = vmatpush1.bf16.xpose.msra.mxu0 0
      %303 = vmatprep.subr.bf16.mxu0 0
      %304 = vmatpush1.bf16.xpose.msra.mxu0 0
      %305 = vmatprep.subr.bf16.mxu0 0
      %306 = vmatpush1.bf16.xpose.msra.mxu0 0
      %307 = vmatprep.subr.bf16.mxu0 0
      %308 = vmatpush1.bf16.xpose.msra.mxu0 0
      %309 = vmatprep.subr.bf16.mxu0 0
      %310 = vmatpush1.bf16.xpose.msra.mxu0 0
      %311 = vmatprep.subr.bf16.mxu0 0
      %312 = vmatpush1.bf16.xpose.msra.mxu0 0
      %313 = vmatprep.subr.bf16.mxu0 0
      %314 = vmatpush1.bf16.xpose.msra.mxu0 0
      %315 = vmatprep.subr.bf16.mxu0 0
      %316 = vmatpush1.bf16.xpose.msra.mxu0 0
      %317 = vmatprep.subr.bf16.mxu0 0
      %318 = vmatpush1.bf16.xpose.msra.mxu0 0
      %319 = vmatprep.subr.bf16.mxu0 0
      %320 = vmatpush1.bf16.xpose.msra.mxu0 0
      %321 = vmatprep.subr.bf16.mxu0 0
      %322 = vmatpush1.bf16.xpose.msra.mxu0 0
      %323 = vmatprep.subr.bf16.mxu0 0
      %324 = vmatpush1.bf16.xpose.msra.mxu0 0
      %325 = vmatprep.subr.bf16.mxu0 0
      %326 = vmatpush1.bf16.xpose.msra.mxu0 0
      %327 = vmatprep.mubr.bf16.mxu0 0
      %328 = vmatmul.mubr.bf16.gmra.mrb[0].mxu0 %v290
      %v329 = vpop.f32.mrb[0].mxu0
      %v330 = vadd.f32 0.0, %v329
      %v331 = vpop.f32.mrb[0].mxu0
      %v332 = vpop.f32.mrb[0].mxu0
      %v333 = vpop.f32.mrb[0].mxu0
      %334 = vdwg.mxu0
      %v335 = vmul.f32 %v330, 0.25
      %v336 = vsel %vm168, %v335, -1e+09
      %v337 = vsel %vm223, %v336, -inf
      %338 = vmax.xlane.f32.xlu0 %v337
      %v339 = vpop.xlane.xlu0 %338
      %v340 = vsub.f32 %v336, %v339
      %v341 = vmul.f32 %v340, 1.442695
      %v342 = vpow.pop %v341
      %v343 = vsel %vm223, %v342, 0.0
      %344 = vadd.xlane.f32.xlu0 %v343
      %v345 = vpop.xlane.xlu0 %344
      %v346 = vpack.c.bf16 %v342, %v342
      %347 = vrot.lane.b32.xlu0 %v171, 48
      %v348 = vpop.permute.xlu0 %347
      %v350 = vsel %vm223, %v346, 0
      %v353 = vsel %vm239, %v348, 0
      %355 = vmatprep.subr.bf16.mxu0 0
      %356 = vmatpush1.bf16.msra.mxu0 %v353
      %357 = vmatprep.subr.bf16.mxu0 0
      %358 = vmatpush1.bf16.msra.mxu0 0
      %359 = vmatprep.subr.bf16.mxu0 0
      %360 = vmatpush1.bf16.msra.mxu0 0
      %361 = vmatprep.subr.bf16.mxu0 0
      %362 = vmatpush1.bf16.msra.mxu0 0
      %363 = vmatprep.subr.bf16.mxu0 0
      %364 = vmatpush1.bf16.msra.mxu0 0
      %365 = vmatprep.subr.bf16.mxu0 0
      %366 = vmatpush1.bf16.msra.mxu0 0
      %367 = vmatprep.subr.bf16.mxu0 0
      %368 = vmatpush1.bf16.msra.mxu0 0
      %369 = vmatprep.subr.bf16.mxu0 0
      %370 = vmatpush1.bf16.msra.mxu0 0
      %371 = vmatprep.subr.bf16.mxu0 0
      %372 = vmatpush1.bf16.msra.mxu0 0
      %373 = vmatprep.subr.bf16.mxu0 0
      %374 = vmatpush1.bf16.msra.mxu0 0
      %375 = vmatprep.subr.bf16.mxu0 0
      %376 = vmatpush1.bf16.msra.mxu0 0
      %377 = vmatprep.subr.bf16.mxu0 0
      %378 = vmatpush1.bf16.msra.mxu0 0
      %379 = vmatprep.subr.bf16.mxu0 0
      %380 = vmatpush1.bf16.msra.mxu0 0
      %381 = vmatprep.subr.bf16.mxu0 0
      %382 = vmatpush1.bf16.msra.mxu0 0
      %383 = vmatprep.subr.bf16.mxu0 0
      %384 = vmatpush1.bf16.msra.mxu0 0
      %385 = vmatprep.subr.bf16.mxu0 0
      %386 = vmatpush1.bf16.msra.mxu0 0
      %387 = vmatprep.mubr.bf16.mxu0 0
      %388 = vmatmul.mubr.bf16.gmra.mrb[0].mxu0 %v350
      %v389 = vpop.f32.mrb[0].mxu0
      %v390 = vadd.f32 0.0, %v389
      %v391 = vpop.f32.mrb[0].mxu0
      %v392 = vpop.f32.mrb[0].mxu0
      %v393 = vpop.f32.mrb[0].mxu0
      %394 = vdwg.mxu0
      %v395 = vrcp.pop %v345
      %v396 = vmul.f32 %v390, %v395
      %398 = vrot.lane.b32.xlu0 %v396, 16
      %v399 = vpop.permute.xlu0 %398
      %v401 = vsel %vm174, %v284, %v399
      %v402 = vpack.c.bf16 %v401, %v401
      %vm403 = vcmask 257024
      %404 = vst.msk [vmem:[%s152] sm:$0xf] %vm403, %v402
      %p405 = scmp.lt.s32.totalorder %s13, 1
      %s406 = scalar_select %p405, %s13, 1
      %s407 = smul.addr %s406, 4
      %s408 = scalar_lea.vmem %s2, %s407
      // Predicated region
      $region29: #{forward.13} parent=27 // pred_check
        %p409 = pneg %p83
      $region30: #{forward.13} parent=27 // pred_check_branch
        %411 = sbr.rel (%p409) target = $region32
      $region31: #{forward.13} parent=27 // pred_region
        _
      $region32: #{forward.13} parent=27 // pred_fallthru
        _
    $region28: #{forward.13} parent=5 // pred_fallthru
      _
    %p412 = scmp.le.s32.totalorder 2, %s8
    // Predicated region
    $region33: #{forward.13} parent=5 // pred_check
      %p413 = pneg %p412
    $region34: #{forward.13} parent=5 // pred_check_branch
      %415 = sbr.rel (%p413) target = $region36
    $region35: #{forward.13} parent=5 // pred_region
      %s416 = ssub.s32 %s8, 2
      // Predicated region
      $region37: #{forward.13} parent=35 // pred_check
        %p417 = pneg %p89
      $region38: #{forward.13} parent=35 // pred_check_branch
        %419 = sbr.rel (%p417) target = $region40
      $region39: #{forward.13} parent=35 // pred_region
        %p420 = scmp.lt.s32.totalorder %s14, 1
        %s421 = scalar_select %p420, %s14, 1
        %s422 = smul.addr %s421, 4
        %s423 = scalar_lea.vmem %s2, %s422
      $region40: #{forward.13} parent=35 // pred_fallthru
        _
    $region36: #{forward.13} parent=5 // pred_fallthru
      _
  $region6: #{forward.13} parent=0 // loop_footer
    %s12 = sadd.s32 1, %s8
  $region7: #{forward.13} parent=0 // loop_footer_branch
    %7 = sbr.rel target = $region3
  $region8: #{forward.13} parent=0 // loop_exit
    _

// kernel: forward.22
$region0: #{forward.22}
  #allocation0 [shape = 'u32[]', space=smem, size = 0x4, offset = 0x4, fixed_abs, tag = 'smem constant byte address 0x4 - core index']
  #allocation1 [shape = 'u32[144,128]{1,0:T(1,128)}', space=vmem, size = 0x12000, scoped, tag = 'internal scratch']
  %s0 = inlined_call_operand.vmem [shape: bf16[16,32], index: 0, kind: input, shape index: {}]
  %s1 = inlined_call_operand.vmem [shape: f32[1,32], index: 1, kind: input, shape index: {}]
  %s2 = inlined_call_operand.vmem [shape: f32[1,32], index: 2, kind: input, shape index: {}]
  %s3 = inlined_call_operand.vmem [shape: bf16[16,32], index: 3, kind: output, shape index: {}]
  %s4 = sld [smem:[#allocation0]]
  $region22: #{forward.22} parent=0
    _
  %s6 = ssub.s32 1, %s4
  %s7 = scalar_select 0, %s6, %s4
  // Predicated region
  $region2: #{forward.22} parent=0 // pred_check
    _
  $region3: #{forward.22} parent=0 // pred_check_branch
    %9 = sbr.rel (0) target = $region5
  $region4: #{forward.22} parent=0 // pred_region
    _
  $region5: #{forward.22} parent=0 // pred_fallthru
    _
  // Predicated region
  $region6: #{forward.22} parent=0 // pred_check
    _
  $region7: #{forward.22} parent=0 // pred_check_branch
    %11 = sbr.rel (0) target = $region9
  $region8: #{forward.22} parent=0 // pred_region
    _
  $region9: #{forward.22} parent=0 // pred_fallthru
    _
  // Predicated region
  $region10: #{forward.22} parent=0 // pred_check
    _
  $region11: #{forward.22} parent=0 // pred_check_branch
    %13 = sbr.rel (0) target = $region13
  $region12: #{forward.22} parent=0 // pred_region
    _
  $region13: #{forward.22} parent=0 // pred_fallthru
    _
  %v14 = vld [vmem:[%s0] sm:$0xf]
  %v15 = vld [vmem:[%s0 + $0x4] sm:$0xf]
  %v16 = vunpack.c.l.bf16 %v14
  %v17 = vunpack.c.l.bf16 %v15
  %vm18 = vcmask 261120
  %v19 = vsel %vm18, %v16, 0.0
  %20 = vadd.xlane.f32.xlu0 %v19
  %v21 = vpop.xlane.xlu0 %20
  %v22 = vsel %vm18, %v17, 0.0
  %23 = vadd.xlane.f32.xlu0 %v22
  %v24 = vpop.xlane.xlu0 %23
  %v25 = vrcp.pop 32.0
  %v26 = vmul.f32 %v21, %v25
  %v27 = vmul.f32 %v24, %v25
  %v28 = vsub.f32 %v16, %v26
  %v29 = vsub.f32 %v17, %v27
  %v30 = vmul.f32 %v28, %v28
  %v31 = vmul.f32 %v29, %v29
  %v32 = vsel %vm18, %v30, 0.0
  %33 = vadd.xlane.f32.xlu0 %v32
  %v34 = vpop.xlane.xlu0 %33
  %v35 = vsel %vm18, %v31, 0.0
  %36 = vadd.xlane.f32.xlu0 %v35
  %v37 = vpop.xlane.xlu0 %36
  %v38 = vmul.f32 %v34, %v25
  %v39 = vmul.f32 %v37, %v25
  %v40 = vadd.f32 %v38, 1e-05
  %v41 = vadd.f32 %v39, 1e-05
  %v42 = vrsqrt.pop %v40
  %v43 = vrsqrt.pop %v41
  %v44 = vmul.f32 %v28, %v42
  %v45 = vmul.f32 %v29, %v43
  %v46 = vld [vmem:[%s1] sm:$0x1]
  %v48 = vlaneseq
  %v49 = vshrl.u32 %v48, 7
  %v50 = vsub.s32 0, %v49
  %v51 = vrot.slane %v46, %v50
  %v53 = vmul.f32 %v44, %v51
  %v54 = vmul.f32 %v45, %v51
  %v55 = vld [vmem:[%s2] sm:$0x1]
  %v57 = vlaneseq
  %v58 = vshrl.u32 %v57, 7
  %v59 = vsub.s32 0, %v58
  %v60 = vrot.slane %v55, %v59
  %v62 = vadd.f32 %v53, %v60
  %v63 = vadd.f32 %v54, %v60
  %v64 = vpack.c.bf16 %v63, %v62
  %v66 = vunpack.c.l.b16 %v64
  %v67 = vunpack.c.h.b16 %v64
  %v68 = vpack.c.b16 %v66, %v66
  %v69 = vpack.c.b16 %v67, %v67
  %vm72 = vcmask 257024
  %73 = vst.msk [vmem:[%s3] sm:$0xf] %vm72, %v68
  %74 = vst.msk [vmem:[%s3 + $0x4] sm:$0xf] %vm72, %v69
  // Predicated region
  $region14: #{forward.22} parent=0 // pred_check
    _
  $region15: #{forward.22} parent=0 // pred_check_branch
    %76 = sbr.rel (0) target = $region17
  $region16: #{forward.22} parent=0 // pred_region
    _
  $region17: #{forward.22} parent=0 // pred_fallthru
    _
  // Predicated region
  $region18: #{forward.22} parent=0 // pred_check
    _
  $region19: #{forward.22} parent=0 // pred_check_branch
    %78 = sbr.rel (0) target = $region21
  $region20: #{forward.22} parent=0 // pred_region
    _
  $region21: #{forward.22} parent=0 // pred_fallthru
    _

// kernel: forward.16
$region0: #{forward.16}
  #allocation0 [shape = 'u32[]', space=smem, size = 0x4, offset = 0x4, fixed_abs, tag = 'smem constant byte address 0x4 - core index']
  #allocation1 [shape = 'u32[144,128]{1,0:T(1,128)}', space=vmem, size = 0x12000, scoped, tag = 'internal scratch']
  #allocation2 [shape = 'f32[16,32]{1,0:T(8,128)}', space=vmem, size = 0x2000, scoped, tag = 'scratch operand']
  %s0 = inlined_call_operand.vmem [shape: bf16[16,128], index: 0, kind: input, shape index: {}]
  %s1 = inlined_call_operand.vmem [shape: bf16[128,32], index: 1, kind: input, shape index: {}]
  %s2 = inlined_call_operand.vmem [shape: f32[1,32], index: 2, kind: input, shape index: {}]
  %s3 = inlined_call_operand.vmem [shape: bf16[16,32], index: 3, kind: input, shape index: {}]
  %s4 = inlined_call_operand.vmem [shape: bf16[16,32], index: 4, kind: output, shape index: {}]
  %s5 = sld [smem:[#allocation0]]
  $region34: #{forward.16} parent=0
    _
  %s7 = ssub.s32 1, %s5
  %s8 = scalar_select 0, %s7, %s5
  // Predicated region
  $region2: #{forward.16} parent=0 // pred_check
    _
  $region3: #{forward.16} parent=0 // pred_check_branch
    %10 = sbr.rel (0) target = $region5
  $region4: #{forward.16} parent=0 // pred_region
    _
  $region5: #{forward.16} parent=0 // pred_fallthru
    _
  // Predicated region
  $region6: #{forward.16} parent=0 // pred_check
    _
  $region7: #{forward.16} parent=0 // pred_check_branch
    %12 = sbr.rel (0) target = $region9
  $region8: #{forward.16} parent=0 // pred_region
    _
  $region9: #{forward.16} parent=0 // pred_fallthru
    _
  // Predicated region
  $region10: #{forward.16} parent=0 // pred_check
    _
  $region11: #{forward.16} parent=0 // pred_check_branch
    %14 = sbr.rel (0) target = $region13
  $region12: #{forward.16} parent=0 // pred_region
    _
  $region13: #{forward.16} parent=0 // pred_fallthru
    _
  // Predicated region
  $region14: #{forward.16} parent=0 // pred_check
    _
  $region15: #{forward.16} parent=0 // pred_check_branch
    %16 = sbr.rel (0) target = $region17
  $region16: #{forward.16} parent=0 // pred_region
    _
  $region17: #{forward.16} parent=0 // pred_fallthru
    _
  %p18 = scmp.eq.s32.totalorder 0, 0
  // Predicated region
  $region18: #{forward.16} parent=0 // pred_check
    %p19 = pneg %p18
  $region19: #{forward.16} parent=0 // pred_check_branch
    %21 = sbr.rel (%p19) target = $region21
  $region20: #{forward.16} parent=0 // pred_region
    %vm22 = vcmask 261120
    %23 = vst.msk [vmem:[#allocation2] sm:$0xff] %vm22, 0.0
    %24 = vst.msk [vmem:[#allocation2 + $0x8] sm:$0xff] %vm22, 0.0
  $region21: #{forward.16} parent=0 // pred_fallthru
    _
  %v25 = vld [vmem:[#allocation2] sm:$0xff]
  %v26 = vld [vmem:[#allocation2 + $0x8] sm:$0xff]
  %v27 = vld [vmem:[%s0] sm:$0xf]
  %v28 = vld [vmem:[%s0 + $0x4] sm:$0xf]
  %v29 = vld [vmem:[%s1] sm:$0xf]
  %v30 = vld [vmem:[%s1 + $0x4] sm:$0xf]
  %v31 = vld [vmem:[%s1 + $0x8] sm:$0xf]
  %v32 = vld [vmem:[%s1 + $0xc] sm:$0xf]
  %v33 = vld [vmem:[%s1 + $0x10] sm:$0xf]
  %v34 = vld [vmem:[%s1 + $0x14] sm:$0xf]
  %v35 = vld [vmem:[%s1 + $0x18] sm:$0xf]
  %v36 = vld [vmem:[%s1 + $0x1c] sm:$0xf]
  %v37 = vld [vmem:[%s1 + $0x20] sm:$0xf]
  %v38 = vld [vmem:[%s1 + $0x24] sm:$0xf]
  %v39 = vld [vmem:[%s1 + $0x28] sm:$0xf]
  %v40 = vld [vmem:[%s1 + $0x2c] sm:$0xf]
  %v41 = vld [vmem:[%s1 + $0x30] sm:$0xf]
  %v42 = vld [vmem:[%s1 + $0x34] sm:$0xf]
  %v43 = vld [vmem:[%s1 + $0x38] sm:$0xf]
  %v44 = vld [vmem:[%s1 + $0x3c] sm:$0xf]
  %v47 = vunpack.c.l.b16 %v27
  %v48 = vunpack.c.l.b16 %v28
  %v49 = vpack.c.b16 %v48, %v47
  %v67 = vunpack.c.l.b16 %v29
  %v68 = vunpack.c.l.b16 %v30
  %v69 = vunpack.c.l.b16 %v31
  %v70 = vunpack.c.l.b16 %v32
  %v71 = vunpack.c.l.b16 %v33
  %v72 = vunpack.c.l.b16 %v34
  %v73 = vunpack.c.l.b16 %v35
  %v74 = vunpack.c.l.b16 %v36
  %v75 = vunpack.c.l.b16 %v37
  %v76 = vunpack.c.l.b16 %v38
  %v77 = vunpack.c.l.b16 %v39
  %v78 = vunpack.c.l.b16 %v40
  %v79 = vunpack.c.l.b16 %v41
  %v80 = vunpack.c.l.b16 %v42
  %v81 = vunpack.c.l.b16 %v43
  %v82 = vunpack.c.l.b16 %v44
  %v83 = vpack.c.b16 %v68, %v67
  %v84 = vpack.c.b16 %v70, %v69
  %v85 = vpack.c.b16 %v72, %v71
  %v86 = vpack.c.b16 %v74, %v73
  %v87 = vpack.c.b16 %v76, %v75
  %v88 = vpack.c.b16 %v78, %v77
  %v89 = vpack.c.b16 %v80, %v79
  %v90 = vpack.c.b16 %v82, %v81
  %99 = vmatprep.subr.bf16.mxu0 0
  %100 = vmatpush1.bf16.msra.mxu0 %v83
  %101 = vmatprep.subr.bf16.mxu0 0
  %102 = vmatpush1.bf16.msra.mxu0 %v84
  %103 = vmatprep.subr.bf16.mxu0 0
  %104 = vmatpush1.bf16.msra.mxu0 %v85
  %105 = vmatprep.subr.bf16.mxu0 0
  %106 = vmatpush1.bf16.msra.mxu0 %v86
  %107 = vmatprep.subr.bf16.mxu0 0
  %108 = vmatpush1.bf16.msra.mxu0 %v87
  %109 = vmatprep.subr.bf16.mxu0 0
  %110 = vmatpush1.bf16.msra.mxu0 %v88
  %111 = vmatprep.subr.bf16.mxu0 0
  %112 = vmatpush1.bf16.msra.mxu0 %v89
  %113 = vmatprep.subr.bf16.mxu0 0
  %114 = vmatpush1.bf16.msra.mxu0 %v90
  %115 = vmatprep.subr.bf16.mxu0 0
  %116 = vmatpush1.bf16.msra.mxu0 0
  %117 = vmatprep.subr.bf16.mxu0 0
  %118 = vmatpush1.bf16.msra.mxu0 0
  %119 = vmatprep.subr.bf16.mxu0 0
  %120 = vmatpush1.bf16.msra.mxu0 0
  %121 = vmatprep.subr.bf16.mxu0 0
  %122 = vmatpush1.bf16.msra.mxu0 0
  %123 = vmatprep.subr.bf16.mxu0 0
  %124 = vmatpush1.bf16.msra.mxu0 0
  %125 = vmatprep.subr.bf16.mxu0 0
  %126 = vmatpush1.bf16.msra.mxu0 0
  %127 = vmatprep.subr.bf16.mxu0 0
  %128 = vmatpush1.bf16.msra.mxu0 0
  %129 = vmatprep.subr.bf16.mxu0 0
  %130 = vmatpush1.bf16.msra.mxu0 0
  %131 = vmatprep.mubr.bf16.mxu0 0
  %132 = vmatmul.mubr.bf16.gmra.mrb[0].mxu0 %v49
  %v133 = vpop.f32.mrb[0].mxu0
  %v134 = vadd.f32 0.0, %v133
  %v135 = vpop.f32.mrb[0].mxu0
  %v136 = vpop.f32.mrb[0].mxu0
  %v137 = vadd.f32 0.0, %v136
  %v138 = vpop.f32.mrb[0].mxu0
  %139 = vdwg.mxu0
  %v140 = vadd.f32 %v25, %v134
  %v141 = vadd.f32 %v26, %v137
  %vm142 = vcmask 261120
  %143 = vst.msk [vmem:[#allocation2] sm:$0xff] %vm142, %v140
  %144 = vst.msk [vmem:[#allocation2 + $0x8] sm:$0xff] %vm142, %v141
  // Predicated region
  $region22: #{forward.16} parent=0 // pred_check
    %p145 = pneg %p18
  $region23: #{forward.16} parent=0 // pred_check_branch
    %147 = sbr.rel (%p145) target = $region25
  $region24: #{forward.16} parent=0 // pred_region
    %v148 = vld [vmem:[#allocation2] sm:$0xff]
    %v149 = vld [vmem:[#allocation2 + $0x8] sm:$0xff]
    %v150 = vld [vmem:[%s2] sm:$0x1]
    %v152 = vlaneseq
    %v153 = vshrl.u32 %v152, 7
    %v154 = vsub.s32 0, %v153
    %v155 = vrot.slane %v150, %v154
    %v157 = vadd.f32 %v148, %v155
    %v158 = vadd.f32 %v149, %v155
    %v159 = vld [vmem:[%s3] sm:$0xf]
    %v160 = vld [vmem:[%s3 + $0x4] sm:$0xf]
    %v161 = vunpack.c.l.bf16 %v159
    %v162 = vunpack.c.l.bf16 %v160
    %v163 = vadd.f32 %v157, %v161
    %v164 = vadd.f32 %v158, %v162
    %v165 = vpack.c.bf16 %v164, %v163
    %v167 = vunpack.c.l.b16 %v165
    %v168 = vunpack.c.h.b16 %v165
    %v169 = vpack.c.b16 %v167, %v167
    %v170 = vpack.c.b16 %v168, %v168
    %vm173 = vcmask 257024
    %174 = vst.msk [vmem:[%s4] sm:$0xf] %vm173, %v169
    %175 = vst.msk [vmem:[%s4 + $0x4] sm:$0xf] %vm173, %v170
  $region25: #{forward.16} parent=0 // pred_fallthru
    _
  // Predicated region
  $region26: #{forward.16} parent=0 // pred_check
    _
  $region27: #{forward.16} parent=0 // pred_check_branch
    %177 = sbr.rel (0) target = $region29
  $region28: #{forward.16} parent=0 // pred_region
    _
  $region29: #{forward.16} parent=0 // pred_fallthru
    _
  // Predicated region
  $region30: #{forward.16} parent=0 // pred_check
    _
  $region31: #{forward.16} parent=0 // pred_check_branch
    %179 = sbr.rel (0) target = $region33
  $region32: #{forward.16} parent=0 // pred_region
    _
  $region33: #{forward.16} parent=0 // pred_fallthru
    _

// kernel: forward.23
$region0: #{forward.23}
  #allocation0 [shape = 'u32[]', space=smem, size = 0x4, offset = 0x4, fixed_abs, tag = 'smem constant byte address 0x4 - core index']
  #allocation1 [shape = 'u32[144,128]{1,0:T(1,128)}', space=vmem, size = 0x12000, scoped, tag = 'internal scratch']
  #allocation2 [shape = 'f32[2,128]{1,0:T(2,128)}', space=vmem, size = 0x400, scoped, tag = 'scratch operand']
  %s0 = inlined_call_operand.vmem [shape: bf16[2,256], index: 0, kind: input, shape index: {}]
  %s1 = inlined_call_operand.vmem [shape: bf16[256,128], index: 1, kind: input, shape index: {}]
  %s2 = inlined_call_operand.vmem [shape: f32[1,128], index: 2, kind: input, shape index: {}]
  %s3 = inlined_call_operand.hbm [shape: f32[2,128], index: 3, kind: output, shape index: {}]
  %s4 = sld [smem:[#allocation0]]
  $region30: #{forward.23} parent=0
    _
  %s6 = ssub.s32 1, %s4
  %s7 = scalar_select 0, %s6, %s4
  $region1: #{forward.23} parent=0
    #allocation3 [shape = 'u8[1024]{0}', space=vmem, size = 0x400, scoped, tag = 'output window, operand 0, single buffered']
    #allocation4 [shape = 's32[1]{0}', space=sflag, size = 0x4, scoped, tag = 'scoped memory for forward.23']
    %8 = vsyncpa [#allocation4], 0
    // Predicated region
    $region2: #{forward.23} parent=1 // pred_check
      _
    $region3: #{forward.23} parent=1 // pred_check_branch
      %10 = sbr.rel (0) target = $region5
    $region4: #{forward.23} parent=1 // pred_region
      _
    $region5: #{forward.23} parent=1 // pred_fallthru
      _
    // Predicated region
    $region6: #{forward.23} parent=1 // pred_check
      _
    $region7: #{forward.23} parent=1 // pred_check_branch
      %12 = sbr.rel (0) target = $region9
    $region8: #{forward.23} parent=1 // pred_region
      _
    $region9: #{forward.23} parent=1 // pred_fallthru
      _
    // Predicated region
    $region10: #{forward.23} parent=1 // pred_check
      _
    $region11: #{forward.23} parent=1 // pred_check_branch
      %14 = sbr.rel (0) target = $region13
    $region12: #{forward.23} parent=1 // pred_region
      _
    $region13: #{forward.23} parent=1 // pred_fallthru
      _
    %p16 = scmp.eq.s32.totalorder 0, 0
    // Predicated region
    $region14: #{forward.23} parent=1 // pred_check
      %p17 = pneg %p16
    $region15: #{forward.23} parent=1 // pred_check_branch
      %19 = sbr.rel (%p17) target = $region17
    $region16: #{forward.23} parent=1 // pred_region
      %20 = vst [vmem:[#allocation2] sm:$0x3] 0.0
    $region17: #{forward.23} parent=1 // pred_fallthru
      _
    %v21 = vld [vmem:[#allocation2] sm:$0x3]
    %v22 = vld [vmem:[%s0] sm:$0x3]
    %v23 = vld [vmem:[%s1] sm:$0xf]
    %v24 = vld [vmem:[%s1 + $0x4] sm:$0xf]
    %v25 = vld [vmem:[%s1 + $0x8] sm:$0xf]
    %v26 = vld [vmem:[%s1 + $0xc] sm:$0xf]
    %v27 = vld [vmem:[%s1 + $0x10] sm:$0xf]
    %v28 = vld [vmem:[%s1 + $0x14] sm:$0xf]
    %v29 = vld [vmem:[%s1 + $0x18] sm:$0xf]
    %v30 = vld [vmem:[%s1 + $0x1c] sm:$0xf]
    %v31 = vld [vmem:[%s1 + $0x20] sm:$0xf]
    %v32 = vld [vmem:[%s1 + $0x24] sm:$0xf]
    %v33 = vld [vmem:[%s1 + $0x28] sm:$0xf]
    %v34 = vld [vmem:[%s1 + $0x2c] sm:$0xf]
    %v35 = vld [vmem:[%s1 + $0x30] sm:$0xf]
    %v36 = vld [vmem:[%s1 + $0x34] sm:$0xf]
    %v37 = vld [vmem:[%s1 + $0x38] sm:$0xf]
    %v38 = vld [vmem:[%s1 + $0x3c] sm:$0xf]
    %v39 = vld [vmem:[%s1 + $0x40] sm:$0xf]
    %v40 = vld [vmem:[%s1 + $0x44] sm:$0xf]
    %v41 = vld [vmem:[%s1 + $0x48] sm:$0xf]
    %v42 = vld [vmem:[%s1 + $0x4c] sm:$0xf]
    %v43 = vld [vmem:[%s1 + $0x50] sm:$0xf]
    %v44 = vld [vmem:[%s1 + $0x54] sm:$0xf]
    %v45 = vld [vmem:[%s1 + $0x58] sm:$0xf]
    %v46 = vld [vmem:[%s1 + $0x5c] sm:$0xf]
    %v47 = vld [vmem:[%s1 + $0x60] sm:$0xf]
    %v48 = vld [vmem:[%s1 + $0x64] sm:$0xf]
    %v49 = vld [vmem:[%s1 + $0x68] sm:$0xf]
    %v50 = vld [vmem:[%s1 + $0x6c] sm:$0xf]
    %v51 = vld [vmem:[%s1 + $0x70] sm:$0xf]
    %v52 = vld [vmem:[%s1 + $0x74] sm:$0xf]
    %v53 = vld [vmem:[%s1 + $0x78] sm:$0xf]
    %v54 = vld [vmem:[%s1 + $0x7c] sm:$0xf]
    %v57 = vunpack.c.l.s4 1966171168
    %v58 = vunpack.c.0.s8 %v57
    %v59 = vlaneseq
    %v60 = vshrl.u32 %v59, 7
    %v61 = vsub.s32 %v58, %v60
    %v62 = vrot.slane %v22, %v61
    %v63 = vcombine.high %v62, %v62
    %v65 = vunpack.c.l.s4 1966171168
    %v66 = vunpack.c.0.s8 %v65
    %v67 = vlaneseq
    %v68 = vshrl.u32 %v67, 7
    %v69 = vsub.s32 %v66, %v68
    %v70 = vrot.slane %v62, %v69
    %v72 = vunpack.c.l.s4 1966171168
    %v73 = vunpack.c.0.s8 %v72
    %v74 = vlaneseq
    %v75 = vshrl.u32 %v74, 7
    %v76 = vsub.s32 %v73, %v75
    %v77 = vrot.slane %v63, %v76
    %v112 = vunpack.c.l.b16 %v23
    %v113 = vunpack.c.l.b16 %v24
    %v114 = vunpack.c.l.b16 %v25
    %v115 = vunpack.c.l.b16 %v26
    %v116 = vunpack.c.l.b16 %v27
    %v117 = vunpack.c.l.b16 %v28
    %v118 = vunpack.c.l.b16 %v29
    %v119 = vunpack.c.l.b16 %v30
    %v120 = vunpack.c.l.b16 %v31
    %v121 = vunpack.c.l.b16 %v32
    %v122 = vunpack.c.l.b16 %v33
    %v123 = vunpack.c.l.b16 %v34
    %v124 = vunpack.c.l.b16 %v35
    %v125 = vunpack.c.l.b16 %v36
    %v126 = vunpack.c.l.b16 %v37
    %v127 = vunpack.c.l.b16 %v38
    %v128 = vunpack.c.l.b16 %v39
    %v129 = vunpack.c.l.b16 %v40
    %v130 = vunpack.c.l.b16 %v41
    %v131 = vunpack.c.l.b16 %v42
    %v132 = vunpack.c.l.b16 %v43
    %v133 = vunpack.c.l.b16 %v44
    %v134 = vunpack.c.l.b16 %v45
    %v135 = vunpack.c.l.b16 %v46
    %v136 = vunpack.c.l.b16 %v47
    %v137 = vunpack.c.l.b16 %v48
    %v138 = vunpack.c.l.b16 %v49
    %v139 = vunpack.c.l.b16 %v50
    %v140 = vunpack.c.l.b16 %v51
    %v141 = vunpack.c.l.b16 %v52
    %v142 = vunpack.c.l.b16 %v53
    %v143 = vunpack.c.l.b16 %v54
    %v144 = vpack.c.b16 %v113, %v112
    %v145 = vpack.c.b16 %v115, %v114
    %v146 = vpack.c.b16 %v117, %v116
    %v147 = vpack.c.b16 %v119, %v118
    %v148 = vpack.c.b16 %v121, %v120
    %v149 = vpack.c.b16 %v123, %v122
    %v150 = vpack.c.b16 %v125, %v124
    %v151 = vpack.c.b16 %v127, %v126
    %v152 = vpack.c.b16 %v129, %v128
    %v153 = vpack.c.b16 %v131, %v130
    %v154 = vpack.c.b16 %v133, %v132
    %v155 = vpack.c.b16 %v135, %v134
    %v156 = vpack.c.b16 %v137, %v136
    %v157 = vpack.c.b16 %v139, %v138
    %v158 = vpack.c.b16 %v141, %v140
    %v159 = vpack.c.b16 %v143, %v142
    %176 = vmatprep.subr.bf16.mxu0 0
    %177 = vmatpush1.bf16.msra.mxu0 %v144
    %178 = vmatprep.subr.bf16.mxu0 0
    %179 = vmatpush1.bf16.msra.mxu0 %v145
    %180 = vmatprep.subr.bf16.mxu0 0
    %181 = vmatpush1.bf16.msra.mxu0 %v146
    %182 = vmatprep.subr.bf16.mxu0 0
    %183 = vmatpush1.bf16.msra.mxu0 %v147
    %184 = vmatprep.subr.bf16.mxu0 0
    %185 = vmatpush1.bf16.msra.mxu0 %v148
    %186 = vmatprep.subr.bf16.mxu0 0
    %187 = vmatpush1.bf16.msra.mxu0 %v149
    %188 = vmatprep.subr.bf16.mxu0 0
    %189 = vmatpush1.bf16.msra.mxu0 %v150
    %190 = vmatprep.subr.bf16.mxu0 0
    %191 = vmatpush1.bf16.msra.mxu0 %v151
    %192 = vmatprep.subr.bf16.mxu0 0
    %193 = vmatpush1.bf16.msra.mxu0 %v152
    %194 = vmatprep.subr.bf16.mxu0 0
    %195 = vmatpush1.bf16.msra.mxu0 %v153
    %196 = vmatprep.subr.bf16.mxu0 0
    %197 = vmatpush1.bf16.msra.mxu0 %v154
    %198 = vmatprep.subr.bf16.mxu0 0
    %199 = vmatpush1.bf16.msra.mxu0 %v155
    %200 = vmatprep.subr.bf16.mxu0 0
    %201 = vmatpush1.bf16.msra.mxu0 %v156
    %202 = vmatprep.subr.bf16.mxu0 0
    %203 = vmatpush1.bf16.msra.mxu0 %v157
    %204 = vmatprep.subr.bf16.mxu0 0
    %205 = vmatpush1.bf16.msra.mxu0 %v158
    %206 = vmatprep.subr.bf16.mxu0 0
    %207 = vmatpush1.bf16.msra.mxu0 %v159
    %208 = vmatprep.mubr.bf16.mxu0 %v77
    %209 = vmatmul.mubr.bf16.gmra.mrb[0].mxu0 %v70
    %v210 = vpop.f32.mrb[0].mxu0
    %v211 = vadd.f32 0.0, %v210
    %v212 = vpop.f32.mrb[0].mxu0
    %v213 = vpop.f32.mrb[0].mxu0
    %v214 = vpop.f32.mrb[0].mxu0
    %215 = vdwg.mxu0
    %v216 = vadd.f32 %v21, %v211
    %217 = vst [vmem:[#allocation2] sm:$0x3] %v216
    // Predicated region
    $region18: #{forward.23} parent=1 // pred_check
      %p218 = pneg %p16
    $region19: #{forward.23} parent=1 // pred_check_branch
      %220 = sbr.rel (%p218) target = $region21
    $region20: #{forward.23} parent=1 // pred_region
      %v221 = vld [vmem:[#allocation2] sm:$0x3]
      %v222 = vld [vmem:[%s2] sm:$0x1]
      %v224 = vlaneseq
      %v225 = vshrl.u32 %v224, 7
      %v226 = vsub.s32 0, %v225
      %v227 = vrot.slane %v222, %v226
      %v229 = vadd.f32 %v221, %v227
      %230 = vst [vmem:[#allocation3] sm:$0x3] %v229
    $region21: #{forward.23} parent=1 // pred_fallthru
      _
    // Predicated region
    $region22: #{forward.23} parent=1 // pred_check
      _
    $region23: #{forward.23} parent=1 // pred_check_branch
      %232 = sbr.rel (0) target = $region25
    $region24: #{forward.23} parent=1 // pred_region
      %s234 = ssub.s32 32, 32
      %235 = vsyncadd [#allocation4], %s234
      %s237 = sshll.u32 [#allocation3], 4
      %s238 = int_to_ptr.vmem [resolvable:$true] %s237
      %240 = dma.vmem_to_hbm [thread:$0]  %s238, 32, %s3, [#allocation4]
    $region25: #{forward.23} parent=1 // pred_fallthru
      _
    // Predicated region
    $region26: #{forward.23} parent=1 // pred_check
      _
    $region27: #{forward.23} parent=1 // pred_check_branch
      %242 = sbr.rel (0) target = $region29
    $region28: #{forward.23} parent=1 // pred_region
      %243 = dma.done [#allocation4], 32
    $region29: #{forward.23} parent=1 // pred_fallthru
      _
    %244 = vsyncpa [#allocation4], 1

</llo_original>
